<compile_context>
chip_gen: v7x
topology: tpu7x:2x2x1
jax: 0.10.0
libtpu: 0.0.40
codegen_flags: <defaults>
</compile_context>

<pallas_src>
import jax
import jax.numpy as jnp
from jax.experimental import pallas as pl
from jax.experimental.pallas import tpu as pltpu

EPS = 1e-5
LANE_PAD = 128   # halo on each side of the flattened pixel (lane) axis
SUBLANE = 8      # channel padding granularity (f32 sublane tile)


def _round_up(v, m):
    return (v + m - 1) // m * m


def _bn_scale_shift(y, gamma, beta):
    """Training-mode BatchNorm folded to one pass.  y: (P, M) f32."""
    m = y.shape[1]
    inv_m = 1.0 / m
    mean = jnp.sum(y, axis=1, keepdims=True) * inv_m
    mean_sq = jnp.sum(y * y, axis=1, keepdims=True) * inv_m
    var = mean_sq - mean * mean                      # biased batch variance
    scale = gamma * jax.lax.rsqrt(var + EPS)
    shift = beta - mean * scale
    return y * scale + shift


def _make_res_block_kernel(N, H, W, cpad, planes, matmul_dtype):
    M = N * H * W
    P = planes
    tap_offsets = [dy * W + dx for dy in (-1, 0, 1) for dx in (-1, 0, 1)]

    def kernel(mask_ref, x_ref, w1_ref, b1_ref, g1_ref, be1_ref,
               w2_ref, b2_ref, g2_ref, be2_ref, o_ref, pad_ref):

        def im2col():
            # Gather the 9 shifted views of the flattened image; out-of-image
            # taps (row/image wrap + halo) are removed by per-lane selects, so
            # the never-written halo region of pad_ref is harmless.
            taps = []
            for t, off in enumerate(tap_offsets):
                valid = mask_ref[t:t + 1, :] > 0.5                      # (1, M)
                tap = pad_ref[:, LANE_PAD + off:LANE_PAD + off + M]     # (cpad, M)
                taps.append(jnp.where(valid, tap, 0.0))
            return jnp.concatenate(taps, axis=0)                        # (9*cpad, M)

        def conv(z_full, w_ref):
            # z_full: (cpad, M) f32 activations; w_ref: (Pout, 9*cpad).
            pad_ref[:, LANE_PAD:LANE_PAD + M] = z_full
            patches = im2col()
            w = w_ref[...]
            if matmul_dtype != jnp.float32:   # bf16 MXU path (v6e / v7x)
                patches = patches.astype(matmul_dtype)
                w = w.astype(matmul_dtype)
            return jnp.dot(w, patches, preferred_element_type=jnp.float32)

        # ---- conv1 with the 1x1 downsample fused in as rows P:2P ----
        y = conv(x_ref[...], w1_ref)                     # (2P, M)
        conv1 = y[0:P, :] + b1_ref[...]
        identity = y[P:2 * P, :]

        # ---- bn1 + relu ----
        h = jnp.maximum(_bn_scale_shift(conv1, g1_ref[...], be1_ref[...]), 0.0)

        # ---- conv2 + bn2 ----
        if P != cpad:
            h = jnp.concatenate(
                [h, jnp.zeros((cpad - P, M), h.dtype)], axis=0)
        y2 = conv(h, w2_ref) + b2_ref[...]               # (P, M)
        y2 = _bn_scale_shift(y2, g2_ref[...], be2_ref[...])

        # ---- residual add + relu, lane-dense store ----
        o_ref[...] = jnp.maximum(y2 + identity, 0.0)

    return kernel


def res_block_forward(x_nchw, w1_hwio, b1, g1, be1, w2_hwio, b2, g2, be2, wd,
                      matmul_dtype=jnp.float32):
    N, Cin, H, W = x_nchw.shape
    P = w1_hwio.shape[-1]
    M = N * H * W
    assert W + 1 <= LANE_PAD
    cpad = max(_round_up(Cin, SUBLANE), _round_up(P, SUBLANE))
    f32 = jnp.float32

    # activations: NCHW -> (channels, flattened pixels), pixels on the lane axis
    x_cm = jnp.transpose(x_nchw, (1, 0, 2, 3)).reshape(Cin, M).astype(f32)
    x_cm = jnp.pad(x_cm, ((0, cpad - Cin), (0, 0)))

    # weights: HWIO -> (P_out, 9*cpad), column index = tap*cpad + c
    def to_mat(w_hwio):
        kh, kw, ci, co = w_hwio.shape
        w = jnp.pad(w_hwio.astype(f32), ((0, 0), (0, 0), (0, cpad - ci), (0, 0)))
        return jnp.transpose(w, (3, 0, 1, 2)).reshape(co, 9 * cpad)

    w1_mat = to_mat(w1_hwio)                                     # (P, 9*cpad)
    w2_mat = to_mat(w2_hwio)                                     # (P, 9*cpad)
    # fold the 1x1 downsample into conv1 as P extra output rows (centre tap only)
    wd_aug = jnp.zeros((P, 9, cpad), f32).at[:, 4, :Cin].set(wd.T.astype(f32))
    w1_aug = jnp.concatenate([w1_mat, wd_aug.reshape(P, 9 * cpad)], axis=0)

    # per-tap validity masks over the flattened (n, y, x) pixel axis
    m_idx = jnp.arange(M, dtype=jnp.int32)
    xs, ys = m_idx % W, (m_idx // W) % H
    masks = [((ys + dy >= 0) & (ys + dy < H) & (xs + dx >= 0) & (xs + dx < W))
             for dy in (-1, 0, 1) for dx in (-1, 0, 1)]
    mask_arr = jnp.stack(masks).astype(f32)                      # (9, M)

    col = lambda v: v.reshape(-1, 1).astype(f32)                 # (P,) -> (P, 1)

    kernel = _make_res_block_kernel(N, H, W, cpad, P, matmul_dtype)
    vmem = pl.BlockSpec(memory_space=pltpu.MemorySpace.VMEM)
    out_pm = pl.pallas_call(
        kernel,
        out_shape=jax.ShapeDtypeStruct((P, M), f32),
        in_specs=[vmem] * 10,
        out_specs=vmem,
        scratch_shapes=[pltpu.VMEM((cpad, LANE_PAD + M + LANE_PAD), f32)],
        compiler_params=pltpu.CompilerParams(
            vmem_limit_bytes=32 * 1024 * 1024),
    )(mask_arr, x_cm, w1_aug, col(b1), col(g1), col(be1),
      w2_mat, col(b2), col(g2), col(be2))

    # (P, N*H*W) -> NCHW
    return jnp.transpose(out_pm.reshape(P, N, H, W), (1, 0, 2, 3))


# ---------------- pure-JAX reference (module semantics, f32) ----------------
def ref_forward(x_nchw, w1_hwio, b1, g1, be1, w2_hwio, b2, g2, be2, wd):
    x = jnp.transpose(x_nchw, (0, 2, 3, 1)).astype(jnp.float32)

    def conv3(xx, w, b):
        y = jax.lax.conv_general_dilated(
            xx, w, (1, 1), ((1, 1), (1, 1)),
            dimension_numbers=("NHWC", "HWIO", "NHWC"))
        return y + b.reshape(1, 1, 1, -1)

    def bn(xx, g, be):
        mean = jnp.mean(xx, axis=(0, 1, 2), keepdims=True)
        var = jnp.mean(jnp.square(xx - mean), axis=(0, 1, 2), keepdims=True)
        return (xx - mean) * jax.lax.rsqrt(var + EPS) * g.reshape(1, 1, 1, -1) \
               + be.reshape(1, 1, 1, -1)

    out = jnp.maximum(bn(conv3(x, w1_hwio, b1), g1, be1), 0.0)
    out = bn(conv3(out, w2_hwio, b2), g2, be2)
    identity = jnp.einsum("nhwc,cp->nhwp", x, wd)
    out = jnp.maximum(out + identity, 0.0)
    return jnp.transpose(out, (0, 3, 1, 2))


if __name__ == "__main__":
    # Small shapes: batch=2, inplanes=4, planes=8, spatial=16x16, stride=1.
    N, Cin, H, W, P = 2, 4, 16, 16, 8
    key = jax.random.PRNGKey(0)
    ks = jax.random.split(key, 9)

    x = jax.random.normal(ks[0], (N, Cin, H, W), jnp.float32)
    w1 = jax.random.normal(ks[1], (3, 3, Cin, P), jnp.float32) * 0.2
    b1 = jax.random.normal(ks[2], (P,), jnp.float32) * 0.1
    w2 = jax.random.normal(ks[3], (3, 3, P, P), jnp.float32) * 0.2
    b2 = jax.random.normal(ks[4], (P,), jnp.float32) * 0.1
    wd = jax.random.normal(ks[5], (Cin, P), jnp.float32) * 0.2
    g1 = 1.0 + 0.1 * jax.random.normal(ks[6], (P,), jnp.float32)
    be1 = 0.1 * jax.random.normal(ks[7], (P,), jnp.float32)
    g2 = jnp.ones((P,), jnp.float32)      # fresh-BN defaults for bn2
    be2 = jnp.zeros((P,), jnp.float32)

    # bf16 MXU operands on newer gens (v6e/v7x: 2x MXU rate, f32 accumulate);
    # keep f32 matmuls on v5e and older.
    kind = jax.devices()[0].device_kind.lower()
    use_bf16 = not any(t in kind for t in ("v2", "v3", "v4", "v5"))
    mm_dtype = jnp.bfloat16 if use_bf16 else jnp.float32
    atol, rtol = (7.5e-2, 5e-2) if use_bf16 else (2e-3, 2e-3)

    out = jax.block_until_ready(
        res_block_forward(x, w1, b1, g1, be1, w2, b2, g2, be2, wd,
                          matmul_dtype=mm_dtype))
    ref = jax.block_until_ready(
        ref_forward(x, w1, b1, g1, be1, w2, b2, g2, be2, wd))

    assert out.shape == (N, P, H, W), out.shape
    err = float(jnp.max(jnp.abs(out - ref)))
    assert jnp.allclose(out, ref, atol=atol, rtol=rtol), err
    print("KERNEL_OK")
</pallas_src>

<mosaic_0001>
module attributes {stable_mosaic.version = 11 : i64} {
  func.func @kernel(%arg0: memref<9x512xf32, #tpu.memory_space<vmem>>, %arg1: memref<8x512xf32, #tpu.memory_space<vmem>>, %arg2: memref<16x72xf32, #tpu.memory_space<vmem>>, %arg3: memref<8x1xf32, #tpu.memory_space<vmem>>, %arg4: memref<8x1xf32, #tpu.memory_space<vmem>>, %arg5: memref<8x1xf32, #tpu.memory_space<vmem>>, %arg6: memref<8x72xf32, #tpu.memory_space<vmem>>, %arg7: memref<8x1xf32, #tpu.memory_space<vmem>>, %arg8: memref<8x1xf32, #tpu.memory_space<vmem>>, %arg9: memref<8x1xf32, #tpu.memory_space<vmem>>, %arg10: memref<8x512xf32, #tpu.memory_space<vmem>>, %arg11: memref<8x768xf32, #tpu.memory_space<vmem>>) attributes {dimension_semantics = [], scalar_prefetch = 0 : i64, scratch_operands = 1 : i64, tpu.core_type = #tpu.core_type<tc>} {
    %c0 = arith.constant 0 : index
    %c0_0 = arith.constant 0 : index
    %0 = vector.load %arg1[%c0, %c0_0] : memref<8x512xf32, #tpu.memory_space<vmem>>, vector<8x512xf32>
    %c0_1 = arith.constant 0 : index
    %c128 = arith.constant 128 : index
    %1 = vector.load %arg11[%c0_1, %c128] : memref<8x768xf32, #tpu.memory_space<vmem>>, vector<8x512xf32>
    tpu.vector_store %arg11[%c0_1, %c128], %0 {strides = array<i32>} : memref<8x768xf32, #tpu.memory_space<vmem>>, vector<8x512xf32>,
    %c0_2 = arith.constant 0 : index
    %c0_3 = arith.constant 0 : index
    %2 = vector.load %arg0[%c0_2, %c0_3] : memref<9x512xf32, #tpu.memory_space<vmem>>, vector<1x512xf32>
    %cst = arith.constant 5.000000e-01 : f32
    %3 = vector.broadcast %cst : f32 to vector<1x512xf32>
    %4 = arith.cmpf ogt, %2, %3 : vector<1x512xf32>
    %c0_4 = arith.constant 0 : index
    %c111 = arith.constant 111 : index
    %5 = vector.load %arg11[%c0_4, %c111] : memref<8x768xf32, #tpu.memory_space<vmem>>, vector<8x512xf32>
    %cst_5 = arith.constant 0.000000e+00 : f32
    %6 = vector.shape_cast %4 : vector<1x512xi1> to vector<1x512xi1>
    %7 = vector.broadcast %6 : vector<1x512xi1> to vector<8x512xi1>
    %8 = vector.broadcast %cst_5 : f32 to vector<8x512xf32>
    %9 = arith.select %7, %5, %8 : vector<8x512xi1>, vector<8x512xf32>
    %c1 = arith.constant 1 : index
    %c0_6 = arith.constant 0 : index
    %10 = vector.load %arg0[%c1, %c0_6] : memref<9x512xf32, #tpu.memory_space<vmem>>, vector<1x512xf32>
    %cst_7 = arith.constant 5.000000e-01 : f32
    %11 = vector.broadcast %cst_7 : f32 to vector<1x512xf32>
    %12 = arith.cmpf ogt, %10, %11 : vector<1x512xf32>
    %c0_8 = arith.constant 0 : index
    %c112 = arith.constant 112 : index
    %13 = vector.load %arg11[%c0_8, %c112] : memref<8x768xf32, #tpu.memory_space<vmem>>, vector<8x512xf32>
    %cst_9 = arith.constant 0.000000e+00 : f32
    %14 = vector.shape_cast %12 : vector<1x512xi1> to vector<1x512xi1>
    %15 = vector.broadcast %14 : vector<1x512xi1> to vector<8x512xi1>
    %16 = vector.broadcast %cst_9 : f32 to vector<8x512xf32>
    %17 = arith.select %15, %13, %16 : vector<8x512xi1>, vector<8x512xf32>
    %c2 = arith.constant 2 : index
    %c0_10 = arith.constant 0 : index
    %18 = vector.load %arg0[%c2, %c0_10] : memref<9x512xf32, #tpu.memory_space<vmem>>, vector<1x512xf32>
    %cst_11 = arith.constant 5.000000e-01 : f32
    %19 = vector.broadcast %cst_11 : f32 to vector<1x512xf32>
    %20 = arith.cmpf ogt, %18, %19 : vector<1x512xf32>
    %c0_12 = arith.constant 0 : index
    %c113 = arith.constant 113 : index
    %21 = vector.load %arg11[%c0_12, %c113] : memref<8x768xf32, #tpu.memory_space<vmem>>, vector<8x512xf32>
    %cst_13 = arith.constant 0.000000e+00 : f32
    %22 = vector.shape_cast %20 : vector<1x512xi1> to vector<1x512xi1>
    %23 = vector.broadcast %22 : vector<1x512xi1> to vector<8x512xi1>
    %24 = vector.broadcast %cst_13 : f32 to vector<8x512xf32>
    %25 = arith.select %23, %21, %24 : vector<8x512xi1>, vector<8x512xf32>
    %c3 = arith.constant 3 : index
    %c0_14 = arith.constant 0 : index
    %26 = vector.load %arg0[%c3, %c0_14] : memref<9x512xf32, #tpu.memory_space<vmem>>, vector<1x512xf32>
    %cst_15 = arith.constant 5.000000e-01 : f32
    %27 = vector.broadcast %cst_15 : f32 to vector<1x512xf32>
    %28 = arith.cmpf ogt, %26, %27 : vector<1x512xf32>
    %c0_16 = arith.constant 0 : index
    %c127 = arith.constant 127 : index
    %29 = vector.load %arg11[%c0_16, %c127] : memref<8x768xf32, #tpu.memory_space<vmem>>, vector<8x512xf32>
    %cst_17 = arith.constant 0.000000e+00 : f32
    %30 = vector.shape_cast %28 : vector<1x512xi1> to vector<1x512xi1>
    %31 = vector.broadcast %30 : vector<1x512xi1> to vector<8x512xi1>
    %32 = vector.broadcast %cst_17 : f32 to vector<8x512xf32>
    %33 = arith.select %31, %29, %32 : vector<8x512xi1>, vector<8x512xf32>
    %c4 = arith.constant 4 : index
    %c0_18 = arith.constant 0 : index
    %34 = vector.load %arg0[%c4, %c0_18] : memref<9x512xf32, #tpu.memory_space<vmem>>, vector<1x512xf32>
    %cst_19 = arith.constant 5.000000e-01 : f32
    %35 = vector.broadcast %cst_19 : f32 to vector<1x512xf32>
    %36 = arith.cmpf ogt, %34, %35 : vector<1x512xf32>
    %c0_20 = arith.constant 0 : index
    %c128_21 = arith.constant 128 : index
    %37 = vector.load %arg11[%c0_20, %c128_21] : memref<8x768xf32, #tpu.memory_space<vmem>>, vector<8x512xf32>
    %cst_22 = arith.constant 0.000000e+00 : f32
    %38 = vector.shape_cast %36 : vector<1x512xi1> to vector<1x512xi1>
    %39 = vector.broadcast %38 : vector<1x512xi1> to vector<8x512xi1>
    %40 = vector.broadcast %cst_22 : f32 to vector<8x512xf32>
    %41 = arith.select %39, %37, %40 : vector<8x512xi1>, vector<8x512xf32>
    %c5 = arith.constant 5 : index
    %c0_23 = arith.constant 0 : index
    %42 = vector.load %arg0[%c5, %c0_23] : memref<9x512xf32, #tpu.memory_space<vmem>>, vector<1x512xf32>
    %cst_24 = arith.constant 5.000000e-01 : f32
    %43 = vector.broadcast %cst_24 : f32 to vector<1x512xf32>
    %44 = arith.cmpf ogt, %42, %43 : vector<1x512xf32>
    %c0_25 = arith.constant 0 : index
    %c129 = arith.constant 129 : index
    %45 = vector.load %arg11[%c0_25, %c129] : memref<8x768xf32, #tpu.memory_space<vmem>>, vector<8x512xf32>
    %cst_26 = arith.constant 0.000000e+00 : f32
    %46 = vector.shape_cast %44 : vector<1x512xi1> to vector<1x512xi1>
    %47 = vector.broadcast %46 : vector<1x512xi1> to vector<8x512xi1>
    %48 = vector.broadcast %cst_26 : f32 to vector<8x512xf32>
    %49 = arith.select %47, %45, %48 : vector<8x512xi1>, vector<8x512xf32>
    %c6 = arith.constant 6 : index
    %c0_27 = arith.constant 0 : index
    %50 = vector.load %arg0[%c6, %c0_27] : memref<9x512xf32, #tpu.memory_space<vmem>>, vector<1x512xf32>
    %cst_28 = arith.constant 5.000000e-01 : f32
    %51 = vector.broadcast %cst_28 : f32 to vector<1x512xf32>
    %52 = arith.cmpf ogt, %50, %51 : vector<1x512xf32>
    %c0_29 = arith.constant 0 : index
    %c143 = arith.constant 143 : index
    %53 = vector.load %arg11[%c0_29, %c143] : memref<8x768xf32, #tpu.memory_space<vmem>>, vector<8x512xf32>
    %cst_30 = arith.constant 0.000000e+00 : f32
    %54 = vector.shape_cast %52 : vector<1x512xi1> to vector<1x512xi1>
    %55 = vector.broadcast %54 : vector<1x512xi1> to vector<8x512xi1>
    %56 = vector.broadcast %cst_30 : f32 to vector<8x512xf32>
    %57 = arith.select %55, %53, %56 : vector<8x512xi1>, vector<8x512xf32>
    %c7 = arith.constant 7 : index
    %c0_31 = arith.constant 0 : index
    %58 = vector.load %arg0[%c7, %c0_31] : memref<9x512xf32, #tpu.memory_space<vmem>>, vector<1x512xf32>
    %cst_32 = arith.constant 5.000000e-01 : f32
    %59 = vector.broadcast %cst_32 : f32 to vector<1x512xf32>
    %60 = arith.cmpf ogt, %58, %59 : vector<1x512xf32>
    %c0_33 = arith.constant 0 : index
    %c144 = arith.constant 144 : index
    %61 = vector.load %arg11[%c0_33, %c144] : memref<8x768xf32, #tpu.memory_space<vmem>>, vector<8x512xf32>
    %cst_34 = arith.constant 0.000000e+00 : f32
    %62 = vector.shape_cast %60 : vector<1x512xi1> to vector<1x512xi1>
    %63 = vector.broadcast %62 : vector<1x512xi1> to vector<8x512xi1>
    %64 = vector.broadcast %cst_34 : f32 to vector<8x512xf32>
    %65 = arith.select %63, %61, %64 : vector<8x512xi1>, vector<8x512xf32>
    %c8 = arith.constant 8 : index
    %c0_35 = arith.constant 0 : index
    %66 = vector.load %arg0[%c8, %c0_35] : memref<9x512xf32, #tpu.memory_space<vmem>>, vector<1x512xf32>
    %cst_36 = arith.constant 5.000000e-01 : f32
    %67 = vector.broadcast %cst_36 : f32 to vector<1x512xf32>
    %68 = arith.cmpf ogt, %66, %67 : vector<1x512xf32>
    %c0_37 = arith.constant 0 : index
    %c145 = arith.constant 145 : index
    %69 = vector.load %arg11[%c0_37, %c145] : memref<8x768xf32, #tpu.memory_space<vmem>>, vector<8x512xf32>
    %cst_38 = arith.constant 0.000000e+00 : f32
    %70 = vector.shape_cast %68 : vector<1x512xi1> to vector<1x512xi1>
    %71 = vector.broadcast %70 : vector<1x512xi1> to vector<8x512xi1>
    %72 = vector.broadcast %cst_38 : f32 to vector<8x512xf32>
    %73 = arith.select %71, %69, %72 : vector<8x512xi1>, vector<8x512xf32>
    %74 = tpu.concatenate %9, %17, %25, %33, %41, %49, %57, %65, %73 in 0 : vector<8x512xf32>, vector<8x512xf32>, vector<8x512xf32>, vector<8x512xf32>, vector<8x512xf32>, vector<8x512xf32>, vector<8x512xf32>, vector<8x512xf32>, vector<8x512xf32> -> vector<72x512xf32>
    %c0_39 = arith.constant 0 : index
    %c0_40 = arith.constant 0 : index
    %75 = vector.load %arg2[%c0_39, %c0_40] : memref<16x72xf32, #tpu.memory_space<vmem>>, vector<16x72xf32>
    %76 = arith.truncf %74 : vector<72x512xf32> to vector<72x512xbf16>
    %77 = arith.truncf %75 : vector<16x72xf32> to vector<16x72xbf16>
    %cst_41 = arith.constant dense<0.000000e+00> : vector<16x512xf32>
    %78 = tpu.matmul %77, %76, %cst_41 {dimension_numbers = #tpu.dot_dimension_numbers<[1], [0], [0], [1], [0, 0, 1, 1], [], []>} : vector<16x72xbf16>, vector<72x512xbf16>, vector<16x512xf32> -> vector<16x512xf32>
    %79 = vector.extract_strided_slice %78 {offsets = [0, 0], sizes = [8, 512], strides = [1, 1]} : vector<16x512xf32> to vector<8x512xf32>
    %c0_42 = arith.constant 0 : index
    %c0_43 = arith.constant 0 : index
    %80 = vector.load %arg3[%c0_42, %c0_43] : memref<8x1xf32, #tpu.memory_space<vmem>>, vector<8x1xf32>
    %81 = vector.broadcast %80 : vector<8x1xf32> to vector<8x512xf32>
    %82 = arith.addf %79, %81 : vector<8x512xf32>
    %83 = vector.extract_strided_slice %78 {offsets = [8, 0], sizes = [8, 512], strides = [1, 1]} : vector<16x512xf32> to vector<8x512xf32>
    %c0_44 = arith.constant 0 : index
    %c0_45 = arith.constant 0 : index
    %84 = vector.load %arg4[%c0_44, %c0_45] : memref<8x1xf32, #tpu.memory_space<vmem>>, vector<8x1xf32>
    %c0_46 = arith.constant 0 : index
    %c0_47 = arith.constant 0 : index
    %85 = vector.load %arg5[%c0_46, %c0_47] : memref<8x1xf32, #tpu.memory_space<vmem>>, vector<8x1xf32>
    %cst_48 = arith.constant dense<0.000000e+00> : vector<8xf32>
    %86 = vector.multi_reduction <add>, %82, %cst_48 [1] : vector<8x512xf32> to vector<8xf32>
    %87 = vector.shape_cast %86 : vector<8xf32> to vector<8x1xf32>
    %cst_49 = arith.constant 0.001953125 : f32
    %88 = vector.broadcast %cst_49 : f32 to vector<8x1xf32>
    %89 = arith.mulf %87, %88 : vector<8x1xf32>
    %90 = arith.mulf %82, %82 : vector<8x512xf32>
    %cst_50 = arith.constant dense<0.000000e+00> : vector<8xf32>
    %91 = vector.multi_reduction <add>, %90, %cst_50 [1] : vector<8x512xf32> to vector<8xf32>
    %92 = vector.shape_cast %91 : vector<8xf32> to vector<8x1xf32>
    %cst_51 = arith.constant 0.001953125 : f32
    %93 = vector.broadcast %cst_51 : f32 to vector<8x1xf32>
    %94 = arith.mulf %92, %93 : vector<8x1xf32>
    %95 = arith.mulf %89, %89 : vector<8x1xf32>
    %96 = arith.subf %94, %95 : vector<8x1xf32>
    %cst_52 = arith.constant 9.99999974E-6 : f32
    %97 = vector.broadcast %cst_52 : f32 to vector<8x1xf32>
    %98 = arith.addf %96, %97 : vector<8x1xf32>
    %99 = math.rsqrt %98 : vector<8x1xf32>
    %100 = arith.mulf %84, %99 : vector<8x1xf32>
    %101 = arith.mulf %89, %100 : vector<8x1xf32>
    %102 = arith.subf %85, %101 : vector<8x1xf32>
    %103 = vector.broadcast %100 : vector<8x1xf32> to vector<8x512xf32>
    %104 = arith.mulf %82, %103 : vector<8x512xf32>
    %105 = vector.broadcast %102 : vector<8x1xf32> to vector<8x512xf32>
    %106 = arith.addf %104, %105 : vector<8x512xf32>
    %cst_53 = arith.constant 0.000000e+00 : f32
    %107 = vector.broadcast %cst_53 : f32 to vector<8x512xf32>
    %108 = arith.maximumf %106, %107 : vector<8x512xf32>
    %c0_54 = arith.constant 0 : index
    %c128_55 = arith.constant 128 : index
    %109 = vector.load %arg11[%c0_54, %c128_55] : memref<8x768xf32, #tpu.memory_space<vmem>>, vector<8x512xf32>
    tpu.vector_store %arg11[%c0_54, %c128_55], %108 {strides = array<i32>} : memref<8x768xf32, #tpu.memory_space<vmem>>, vector<8x512xf32>,
    %c0_56 = arith.constant 0 : index
    %c0_57 = arith.constant 0 : index
    %110 = vector.load %arg0[%c0_56, %c0_57] : memref<9x512xf32, #tpu.memory_space<vmem>>, vector<1x512xf32>
    %cst_58 = arith.constant 5.000000e-01 : f32
    %111 = vector.broadcast %cst_58 : f32 to vector<1x512xf32>
    %112 = arith.cmpf ogt, %110, %111 : vector<1x512xf32>
    %c0_59 = arith.constant 0 : index
    %c111_60 = arith.constant 111 : index
    %113 = vector.load %arg11[%c0_59, %c111_60] : memref<8x768xf32, #tpu.memory_space<vmem>>, vector<8x512xf32>
    %cst_61 = arith.constant 0.000000e+00 : f32
    %114 = vector.shape_cast %112 : vector<1x512xi1> to vector<1x512xi1>
    %115 = vector.broadcast %114 : vector<1x512xi1> to vector<8x512xi1>
    %116 = vector.broadcast %cst_61 : f32 to vector<8x512xf32>
    %117 = arith.select %115, %113, %116 : vector<8x512xi1>, vector<8x512xf32>
    %c1_62 = arith.constant 1 : index
    %c0_63 = arith.constant 0 : index
    %118 = vector.load %arg0[%c1_62, %c0_63] : memref<9x512xf32, #tpu.memory_space<vmem>>, vector<1x512xf32>
    %cst_64 = arith.constant 5.000000e-01 : f32
    %119 = vector.broadcast %cst_64 : f32 to vector<1x512xf32>
    %120 = arith.cmpf ogt, %118, %119 : vector<1x512xf32>
    %c0_65 = arith.constant 0 : index
    %c112_66 = arith.constant 112 : index
    %121 = vector.load %arg11[%c0_65, %c112_66] : memref<8x768xf32, #tpu.memory_space<vmem>>, vector<8x512xf32>
    %cst_67 = arith.constant 0.000000e+00 : f32
    %122 = vector.shape_cast %120 : vector<1x512xi1> to vector<1x512xi1>
    %123 = vector.broadcast %122 : vector<1x512xi1> to vector<8x512xi1>
    %124 = vector.broadcast %cst_67 : f32 to vector<8x512xf32>
    %125 = arith.select %123, %121, %124 : vector<8x512xi1>, vector<8x512xf32>
    %c2_68 = arith.constant 2 : index
    %c0_69 = arith.constant 0 : index
    %126 = vector.load %arg0[%c2_68, %c0_69] : memref<9x512xf32, #tpu.memory_space<vmem>>, vector<1x512xf32>
    %cst_70 = arith.constant 5.000000e-01 : f32
    %127 = vector.broadcast %cst_70 : f32 to vector<1x512xf32>
    %128 = arith.cmpf ogt, %126, %127 : vector<1x512xf32>
    %c0_71 = arith.constant 0 : index
    %c113_72 = arith.constant 113 : index
    %129 = vector.load %arg11[%c0_71, %c113_72] : memref<8x768xf32, #tpu.memory_space<vmem>>, vector<8x512xf32>
    %cst_73 = arith.constant 0.000000e+00 : f32
    %130 = vector.shape_cast %128 : vector<1x512xi1> to vector<1x512xi1>
    %131 = vector.broadcast %130 : vector<1x512xi1> to vector<8x512xi1>
    %132 = vector.broadcast %cst_73 : f32 to vector<8x512xf32>
    %133 = arith.select %131, %129, %132 : vector<8x512xi1>, vector<8x512xf32>
    %c3_74 = arith.constant 3 : index
    %c0_75 = arith.constant 0 : index
    %134 = vector.load %arg0[%c3_74, %c0_75] : memref<9x512xf32, #tpu.memory_space<vmem>>, vector<1x512xf32>
    %cst_76 = arith.constant 5.000000e-01 : f32
    %135 = vector.broadcast %cst_76 : f32 to vector<1x512xf32>
    %136 = arith.cmpf ogt, %134, %135 : vector<1x512xf32>
    %c0_77 = arith.constant 0 : index
    %c127_78 = arith.constant 127 : index
    %137 = vector.load %arg11[%c0_77, %c127_78] : memref<8x768xf32, #tpu.memory_space<vmem>>, vector<8x512xf32>
    %cst_79 = arith.constant 0.000000e+00 : f32
    %138 = vector.shape_cast %136 : vector<1x512xi1> to vector<1x512xi1>
    %139 = vector.broadcast %138 : vector<1x512xi1> to vector<8x512xi1>
    %140 = vector.broadcast %cst_79 : f32 to vector<8x512xf32>
    %141 = arith.select %139, %137, %140 : vector<8x512xi1>, vector<8x512xf32>
    %c4_80 = arith.constant 4 : index
    %c0_81 = arith.constant 0 : index
    %142 = vector.load %arg0[%c4_80, %c0_81] : memref<9x512xf32, #tpu.memory_space<vmem>>, vector<1x512xf32>
    %cst_82 = arith.constant 5.000000e-01 : f32
    %143 = vector.broadcast %cst_82 : f32 to vector<1x512xf32>
    %144 = arith.cmpf ogt, %142, %143 : vector<1x512xf32>
    %c0_83 = arith.constant 0 : index
    %c128_84 = arith.constant 128 : index
    %145 = vector.load %arg11[%c0_83, %c128_84] : memref<8x768xf32, #tpu.memory_space<vmem>>, vector<8x512xf32>
    %cst_85 = arith.constant 0.000000e+00 : f32
    %146 = vector.shape_cast %144 : vector<1x512xi1> to vector<1x512xi1>
    %147 = vector.broadcast %146 : vector<1x512xi1> to vector<8x512xi1>
    %148 = vector.broadcast %cst_85 : f32 to vector<8x512xf32>
    %149 = arith.select %147, %145, %148 : vector<8x512xi1>, vector<8x512xf32>
    %c5_86 = arith.constant 5 : index
    %c0_87 = arith.constant 0 : index
    %150 = vector.load %arg0[%c5_86, %c0_87] : memref<9x512xf32, #tpu.memory_space<vmem>>, vector<1x512xf32>
    %cst_88 = arith.constant 5.000000e-01 : f32
    %151 = vector.broadcast %cst_88 : f32 to vector<1x512xf32>
    %152 = arith.cmpf ogt, %150, %151 : vector<1x512xf32>
    %c0_89 = arith.constant 0 : index
    %c129_90 = arith.constant 129 : index
    %153 = vector.load %arg11[%c0_89, %c129_90] : memref<8x768xf32, #tpu.memory_space<vmem>>, vector<8x512xf32>
    %cst_91 = arith.constant 0.000000e+00 : f32
    %154 = vector.shape_cast %152 : vector<1x512xi1> to vector<1x512xi1>
    %155 = vector.broadcast %154 : vector<1x512xi1> to vector<8x512xi1>
    %156 = vector.broadcast %cst_91 : f32 to vector<8x512xf32>
    %157 = arith.select %155, %153, %156 : vector<8x512xi1>, vector<8x512xf32>
    %c6_92 = arith.constant 6 : index
    %c0_93 = arith.constant 0 : index
    %158 = vector.load %arg0[%c6_92, %c0_93] : memref<9x512xf32, #tpu.memory_space<vmem>>, vector<1x512xf32>
    %cst_94 = arith.constant 5.000000e-01 : f32
    %159 = vector.broadcast %cst_94 : f32 to vector<1x512xf32>
    %160 = arith.cmpf ogt, %158, %159 : vector<1x512xf32>
    %c0_95 = arith.constant 0 : index
    %c143_96 = arith.constant 143 : index
    %161 = vector.load %arg11[%c0_95, %c143_96] : memref<8x768xf32, #tpu.memory_space<vmem>>, vector<8x512xf32>
    %cst_97 = arith.constant 0.000000e+00 : f32
    %162 = vector.shape_cast %160 : vector<1x512xi1> to vector<1x512xi1>
    %163 = vector.broadcast %162 : vector<1x512xi1> to vector<8x512xi1>
    %164 = vector.broadcast %cst_97 : f32 to vector<8x512xf32>
    %165 = arith.select %163, %161, %164 : vector<8x512xi1>, vector<8x512xf32>
    %c7_98 = arith.constant 7 : index
    %c0_99 = arith.constant 0 : index
    %166 = vector.load %arg0[%c7_98, %c0_99] : memref<9x512xf32, #tpu.memory_space<vmem>>, vector<1x512xf32>
    %cst_100 = arith.constant 5.000000e-01 : f32
    %167 = vector.broadcast %cst_100 : f32 to vector<1x512xf32>
    %168 = arith.cmpf ogt, %166, %167 : vector<1x512xf32>
    %c0_101 = arith.constant 0 : index
    %c144_102 = arith.constant 144 : index
    %169 = vector.load %arg11[%c0_101, %c144_102] : memref<8x768xf32, #tpu.memory_space<vmem>>, vector<8x512xf32>
    %cst_103 = arith.constant 0.000000e+00 : f32
    %170 = vector.shape_cast %168 : vector<1x512xi1> to vector<1x512xi1>
    %171 = vector.broadcast %170 : vector<1x512xi1> to vector<8x512xi1>
    %172 = vector.broadcast %cst_103 : f32 to vector<8x512xf32>
    %173 = arith.select %171, %169, %172 : vector<8x512xi1>, vector<8x512xf32>
    %c8_104 = arith.constant 8 : index
    %c0_105 = arith.constant 0 : index
    %174 = vector.load %arg0[%c8_104, %c0_105] : memref<9x512xf32, #tpu.memory_space<vmem>>, vector<1x512xf32>
    %cst_106 = arith.constant 5.000000e-01 : f32
    %175 = vector.broadcast %cst_106 : f32 to vector<1x512xf32>
    %176 = arith.cmpf ogt, %174, %175 : vector<1x512xf32>
    %c0_107 = arith.constant 0 : index
    %c145_108 = arith.constant 145 : index
    %177 = vector.load %arg11[%c0_107, %c145_108] : memref<8x768xf32, #tpu.memory_space<vmem>>, vector<8x512xf32>
    %cst_109 = arith.constant 0.000000e+00 : f32
    %178 = vector.shape_cast %176 : vector<1x512xi1> to vector<1x512xi1>
    %179 = vector.broadcast %178 : vector<1x512xi1> to vector<8x512xi1>
    %180 = vector.broadcast %cst_109 : f32 to vector<8x512xf32>
    %181 = arith.select %179, %177, %180 : vector<8x512xi1>, vector<8x512xf32>
    %182 = tpu.concatenate %117, %125, %133, %141, %149, %157, %165, %173, %181 in 0 : vector<8x512xf32>, vector<8x512xf32>, vector<8x512xf32>, vector<8x512xf32>, vector<8x512xf32>, vector<8x512xf32>, vector<8x512xf32>, vector<8x512xf32>, vector<8x512xf32> -> vector<72x512xf32>
    %c0_110 = arith.constant 0 : index
    %c0_111 = arith.constant 0 : index
    %183 = vector.load %arg6[%c0_110, %c0_111] : memref<8x72xf32, #tpu.memory_space<vmem>>, vector<8x72xf32>
    %184 = arith.truncf %182 : vector<72x512xf32> to vector<72x512xbf16>
    %185 = arith.truncf %183 : vector<8x72xf32> to vector<8x72xbf16>
    %cst_112 = arith.constant dense<0.000000e+00> : vector<8x512xf32>
    %186 = tpu.matmul %185, %184, %cst_112 {dimension_numbers = #tpu.dot_dimension_numbers<[1], [0], [0], [1], [0, 0, 1, 1], [], []>} : vector<8x72xbf16>, vector<72x512xbf16>, vector<8x512xf32> -> vector<8x512xf32>
    %c0_113 = arith.constant 0 : index
    %c0_114 = arith.constant 0 : index
    %187 = vector.load %arg7[%c0_113, %c0_114] : memref<8x1xf32, #tpu.memory_space<vmem>>, vector<8x1xf32>
    %188 = vector.broadcast %187 : vector<8x1xf32> to vector<8x512xf32>
    %189 = arith.addf %186, %188 : vector<8x512xf32>
    %c0_115 = arith.constant 0 : index
    %c0_116 = arith.constant 0 : index
    %190 = vector.load %arg8[%c0_115, %c0_116] : memref<8x1xf32, #tpu.memory_space<vmem>>, vector<8x1xf32>
    %c0_117 = arith.constant 0 : index
    %c0_118 = arith.constant 0 : index
    %191 = vector.load %arg9[%c0_117, %c0_118] : memref<8x1xf32, #tpu.memory_space<vmem>>, vector<8x1xf32>
    %cst_119 = arith.constant dense<0.000000e+00> : vector<8xf32>
    %192 = vector.multi_reduction <add>, %189, %cst_119 [1] : vector<8x512xf32> to vector<8xf32>
    %193 = vector.shape_cast %192 : vector<8xf32> to vector<8x1xf32>
    %cst_120 = arith.constant 0.001953125 : f32
    %194 = vector.broadcast %cst_120 : f32 to vector<8x1xf32>
    %195 = arith.mulf %193, %194 : vector<8x1xf32>
    %196 = arith.mulf %189, %189 : vector<8x512xf32>
    %cst_121 = arith.constant dense<0.000000e+00> : vector<8xf32>
    %197 = vector.multi_reduction <add>, %196, %cst_121 [1] : vector<8x512xf32> to vector<8xf32>
    %198 = vector.shape_cast %197 : vector<8xf32> to vector<8x1xf32>
    %cst_122 = arith.constant 0.001953125 : f32
    %199 = vector.broadcast %cst_122 : f32 to vector<8x1xf32>
    %200 = arith.mulf %198, %199 : vector<8x1xf32>
    %201 = arith.mulf %195, %195 : vector<8x1xf32>
    %202 = arith.subf %200, %201 : vector<8x1xf32>
    %cst_123 = arith.constant 9.99999974E-6 : f32
    %203 = vector.broadcast %cst_123 : f32 to vector<8x1xf32>
    %204 = arith.addf %202, %203 : vector<8x1xf32>
    %205 = math.rsqrt %204 : vector<8x1xf32>
    %206 = arith.mulf %190, %205 : vector<8x1xf32>
    %207 = arith.mulf %195, %206 : vector<8x1xf32>
    %208 = arith.subf %191, %207 : vector<8x1xf32>
    %209 = vector.broadcast %206 : vector<8x1xf32> to vector<8x512xf32>
    %210 = arith.mulf %189, %209 : vector<8x512xf32>
    %211 = vector.broadcast %208 : vector<8x1xf32> to vector<8x512xf32>
    %212 = arith.addf %210, %211 : vector<8x512xf32>
    %213 = arith.addf %212, %83 : vector<8x512xf32>
    %cst_124 = arith.constant 0.000000e+00 : f32
    %214 = vector.broadcast %cst_124 : f32 to vector<8x512xf32>
    %215 = arith.maximumf %213, %214 : vector<8x512xf32>
    %c0_125 = arith.constant 0 : index
    %c0_126 = arith.constant 0 : index
    %216 = vector.load %arg10[%c0_125, %c0_126] : memref<8x512xf32, #tpu.memory_space<vmem>>, vector<8x512xf32>
    tpu.vector_store %arg10[%c0_125, %c0_126], %215 {strides = array<i32>} : memref<8x512xf32, #tpu.memory_space<vmem>>, vector<8x512xf32>,
    return
  }
}

</mosaic_0001>

<llo_original>
// kernel: tpu_custom_call.1
$region0: #{tpu_custom_call.1}
  #allocation0 [shape = 'u32[]', space=smem, size = 0x4, offset = 0x4, fixed_abs, tag = 'smem constant byte address 0x4 - core index']
  #allocation1 [shape = 'u32[144,128]{1,0:T(1,128)}', space=vmem, size = 0x12000, scoped, tag = 'internal scratch']
  #allocation2 [shape = 'f32[8,768]{1,0:T(8,128)}', space=vmem, size = 0x6000, scoped, tag = 'scratch operand']
  %s0 = inlined_call_operand.hbm [shape: f32[9,512], index: 0, kind: input, shape index: {}]
  %s1 = inlined_call_operand.vmem [shape: f32[8,512], index: 1, kind: input, shape index: {}]
  %s2 = inlined_call_operand.vmem [shape: f32[16,72], index: 2, kind: input, shape index: {}]
  %s3 = inlined_call_operand.vmem [shape: f32[8,1], index: 3, kind: input, shape index: {}]
  %s4 = inlined_call_operand.vmem [shape: f32[8,1], index: 4, kind: input, shape index: {}]
  %s5 = inlined_call_operand.vmem [shape: f32[8,1], index: 5, kind: input, shape index: {}]
  %s6 = inlined_call_operand.vmem [shape: f32[8,72], index: 6, kind: input, shape index: {}]
  %s7 = inlined_call_operand.vmem [shape: f32[8,1], index: 7, kind: input, shape index: {}]
  %s8 = inlined_call_operand.vmem [shape: f32[8,1], index: 8, kind: input, shape index: {}]
  %s9 = inlined_call_operand.vmem [shape: f32[8,1], index: 9, kind: input, shape index: {}]
  %s10 = inlined_call_operand.hbm [shape: f32[8,512], index: 10, kind: output, shape index: {}]
  %s11 = sld [smem:[#allocation0]]
  $region54: #{tpu_custom_call.1} parent=0
    _
  %s13 = ssub.s32 1, %s11
  %s14 = scalar_select 0, %s13, %s11
  $region1: #{tpu_custom_call.1} parent=0
    #allocation3 [shape = 'u8[32768]{0}', space=vmem, size = 0x8000, scoped, tag = 'input window, operand 0, single buffered']
    #allocation4 [shape = 's32[1]{0}', space=sflag, size = 0x4, scoped, tag = 'scoped memory for tpu_custom_call.1']
    #allocation5 [shape = 's32[1]{0}', space=sflag, size = 0x4, scoped, tag = 'scoped memory for tpu_custom_call.1']
    #allocation6 [shape = 'u8[16384]{0}', space=vmem, size = 0x4000, scoped, tag = 'output window, operand 0, single buffered']
    %15 = vsyncpa [#allocation4], 0
    %16 = vsyncpa [#allocation5], 0
    // Predicated region
    $region2: #{tpu_custom_call.1} parent=1 // pred_check
      _
    $region3: #{tpu_custom_call.1} parent=1 // pred_check_branch
      %18 = sbr.rel (0) target = $region5
    $region4: #{tpu_custom_call.1} parent=1 // pred_region
      %s20 = ssub.s32 1024, 1024
      %21 = vsyncadd [#allocation4], %s20
      %s22 = sshll.u32 [#allocation3], 4
      %s23 = int_to_ptr.vmem [resolvable:$true] %s22
      %28 = dma.hbm_to_vmem [thread:$0]  %s0, 1024, %s23, [#allocation4], 512, 512, 32
    $region5: #{tpu_custom_call.1} parent=1 // pred_fallthru
      _
    // Predicated region
    $region6: #{tpu_custom_call.1} parent=1 // pred_check
      _
    $region7: #{tpu_custom_call.1} parent=1 // pred_check_branch
      %30 = sbr.rel (0) target = $region9
    $region8: #{tpu_custom_call.1} parent=1 // pred_region
      _
    $region9: #{tpu_custom_call.1} parent=1 // pred_fallthru
      _
    // Predicated region
    $region10: #{tpu_custom_call.1} parent=1 // pred_check
      _
    $region11: #{tpu_custom_call.1} parent=1 // pred_check_branch
      %32 = sbr.rel (0) target = $region13
    $region12: #{tpu_custom_call.1} parent=1 // pred_region
      _
    $region13: #{tpu_custom_call.1} parent=1 // pred_fallthru
      _
    // Predicated region
    $region14: #{tpu_custom_call.1} parent=1 // pred_check
      _
    $region15: #{tpu_custom_call.1} parent=1 // pred_check_branch
      %34 = sbr.rel (0) target = $region17
    $region16: #{tpu_custom_call.1} parent=1 // pred_region
      _
    $region17: #{tpu_custom_call.1} parent=1 // pred_fallthru
      _
    // Predicated region
    $region18: #{tpu_custom_call.1} parent=1 // pred_check
      _
    $region19: #{tpu_custom_call.1} parent=1 // pred_check_branch
      %36 = sbr.rel (0) target = $region21
    $region20: #{tpu_custom_call.1} parent=1 // pred_region
      _
    $region21: #{tpu_custom_call.1} parent=1 // pred_fallthru
      _
    // Predicated region
    $region22: #{tpu_custom_call.1} parent=1 // pred_check
      _
    $region23: #{tpu_custom_call.1} parent=1 // pred_check_branch
      %38 = sbr.rel (0) target = $region25
    $region24: #{tpu_custom_call.1} parent=1 // pred_region
      _
    $region25: #{tpu_custom_call.1} parent=1 // pred_fallthru
      _
    // Predicated region
    $region26: #{tpu_custom_call.1} parent=1 // pred_check
      _
    $region27: #{tpu_custom_call.1} parent=1 // pred_check_branch
      %40 = sbr.rel (0) target = $region29
    $region28: #{tpu_custom_call.1} parent=1 // pred_region
      _
    $region29: #{tpu_custom_call.1} parent=1 // pred_fallthru
      _
    // Predicated region
    $region30: #{tpu_custom_call.1} parent=1 // pred_check
      _
    $region31: #{tpu_custom_call.1} parent=1 // pred_check_branch
      %42 = sbr.rel (0) target = $region33
    $region32: #{tpu_custom_call.1} parent=1 // pred_region
      _
    $region33: #{tpu_custom_call.1} parent=1 // pred_fallthru
      _
    // Predicated region
    $region34: #{tpu_custom_call.1} parent=1 // pred_check
      _
    $region35: #{tpu_custom_call.1} parent=1 // pred_check_branch
      %44 = sbr.rel (0) target = $region37
    $region36: #{tpu_custom_call.1} parent=1 // pred_region
      _
    $region37: #{tpu_custom_call.1} parent=1 // pred_fallthru
      _
    // Predicated region
    $region38: #{tpu_custom_call.1} parent=1 // pred_check
      _
    $region39: #{tpu_custom_call.1} parent=1 // pred_check_branch
      %46 = sbr.rel (0) target = $region41
    $region40: #{tpu_custom_call.1} parent=1 // pred_region
      _
    $region41: #{tpu_custom_call.1} parent=1 // pred_fallthru
      _
    // Predicated region
    $region42: #{tpu_custom_call.1} parent=1 // pred_check
      _
    $region43: #{tpu_custom_call.1} parent=1 // pred_check_branch
      %48 = sbr.rel (0) target = $region45
    $region44: #{tpu_custom_call.1} parent=1 // pred_region
      %49 = dma.done [#allocation4], 1024
    $region45: #{tpu_custom_call.1} parent=1 // pred_fallthru
      _
    %v51 = vld [vmem:[%s1] sm:$0xff]
    %v52 = vld [vmem:[%s1 + $0x8] sm:$0xff]
    %v53 = vld [vmem:[%s1 + $0x10] sm:$0xff]
    %v54 = vld [vmem:[%s1 + $0x18] sm:$0xff]
    %55 = vst [vmem:[#allocation2 + $0x8] sm:$0xff] %v51
    %56 = vst [vmem:[#allocation2 + $0x10] sm:$0xff] %v52
    %57 = vst [vmem:[#allocation2 + $0x18] sm:$0xff] %v53
    %58 = vst [vmem:[#allocation2 + $0x20] sm:$0xff] %v54
    %v59 = vld [vmem:[#allocation3] ss:$8 sm:$0xf]
    %vm60 = vcmp.gt.f32.partialorder %v59, 0.5
    %v61 = vld [vmem:[#allocation2] sm:$0xff]
    %v62 = vld [vmem:[#allocation2 + $0x8] sm:$0xff]
    %v63 = vld [vmem:[#allocation2 + $0x10] sm:$0xff]
    %v64 = vld [vmem:[#allocation2 + $0x18] sm:$0xff]
    %v65 = vld [vmem:[#allocation2 + $0x20] sm:$0xff]
    %v66 = vsel %vm60, 1, 0
    %v67 = vlaneseq
    %v68 = vshrl.u32 %v67, 7
    %v69 = vsub.s32 0, %v68
    %v70 = vrot.slane %v66, %v69
    %v71 = vlaneseq
    %v72 = vshrl.u32 %v71, 7
    %v73 = vsub.s32 1, %v72
    %v74 = vrot.slane %v66, %v73
    %v75 = vlaneseq
    %v76 = vshrl.u32 %v75, 7
    %v77 = vsub.s32 2, %v76
    %v78 = vrot.slane %v66, %v77
    %v79 = vlaneseq
    %v80 = vshrl.u32 %v79, 7
    %v81 = vsub.s32 3, %v80
    %v82 = vrot.slane %v66, %v81
    %vm83 = vcmp.eq.s32.totalorder %v70, 1
    %vm84 = vcmp.eq.s32.totalorder %v74, 1
    %vm85 = vcmp.eq.s32.totalorder %v78, 1
    %vm86 = vcmp.eq.s32.totalorder %v82, 1
    %92 = vrot.lane.b32.xlu0 %v61, 17
    %v93 = vpop.permute.xlu0 %92
    %94 = vrot.lane.b32.xlu0 %v62, 17
    %v95 = vpop.permute.xlu0 %94
    %96 = vrot.lane.b32.xlu0 %v63, 17
    %v97 = vpop.permute.xlu0 %96
    %98 = vrot.lane.b32.xlu0 %v64, 17
    %v99 = vpop.permute.xlu0 %98
    %100 = vrot.lane.b32.xlu0 %v65, 17
    %v101 = vpop.permute.xlu0 %100
    %vm102 = vcmask 138240
    %v103 = vsel %vm102, %v93, %v95
    %v104 = vsel %vm102, %v95, %v97
    %v105 = vsel %vm102, %v97, %v99
    %v106 = vsel %vm102, %v99, %v101
    %v111 = vsel %vm83, %v103, 0.0
    %v112 = vsel %vm84, %v104, 0.0
    %v113 = vsel %vm85, %v105, 0.0
    %v114 = vsel %vm86, %v106, 0.0
    %s115 = scalar_lea.vmem [#allocation3], 1
    %v116 = vld [vmem:[%s115] ss:$8 sm:$0xf]
    %vm117 = vcmp.gt.f32.partialorder %v116, 0.5
    %v118 = vsel %vm117, 1, 0
    %v119 = vlaneseq
    %v120 = vshrl.u32 %v119, 7
    %v121 = vsub.s32 0, %v120
    %v122 = vrot.slane %v118, %v121
    %v123 = vlaneseq
    %v124 = vshrl.u32 %v123, 7
    %v125 = vsub.s32 1, %v124
    %v126 = vrot.slane %v118, %v125
    %v127 = vlaneseq
    %v128 = vshrl.u32 %v127, 7
    %v129 = vsub.s32 2, %v128
    %v130 = vrot.slane %v118, %v129
    %v131 = vlaneseq
    %v132 = vshrl.u32 %v131, 7
    %v133 = vsub.s32 3, %v132
    %v134 = vrot.slane %v118, %v133
    %vm135 = vcmp.eq.s32.totalorder %v122, 1
    %vm136 = vcmp.eq.s32.totalorder %v126, 1
    %vm137 = vcmp.eq.s32.totalorder %v130, 1
    %vm138 = vcmp.eq.s32.totalorder %v134, 1
    %139 = vrot.lane.b32.xlu0 %v61, 16
    %v140 = vpop.permute.xlu0 %139
    %141 = vrot.lane.b32.xlu0 %v62, 16
    %v142 = vpop.permute.xlu0 %141
    %143 = vrot.lane.b32.xlu0 %v63, 16
    %v144 = vpop.permute.xlu0 %143
    %145 = vrot.lane.b32.xlu0 %v64, 16
    %v146 = vpop.permute.xlu0 %145
    %147 = vrot.lane.b32.xlu0 %v65, 16
    %v148 = vpop.permute.xlu0 %147
    %vm149 = vcmask 130048
    %v150 = vsel %vm149, %v140, %v142
    %v151 = vsel %vm149, %v142, %v144
    %v152 = vsel %vm149, %v144, %v146
    %v153 = vsel %vm149, %v146, %v148
    %v158 = vsel %vm135, %v150, 0.0
    %v159 = vsel %vm136, %v151, 0.0
    %v160 = vsel %vm137, %v152, 0.0
    %v161 = vsel %vm138, %v153, 0.0
    %s162 = scalar_lea.vmem [#allocation3], 2
    %v163 = vld [vmem:[%s162] ss:$8 sm:$0xf]
    %vm164 = vcmp.gt.f32.partialorder %v163, 0.5
    %v165 = vsel %vm164, 1, 0
    %v166 = vlaneseq
    %v167 = vshrl.u32 %v166, 7
    %v168 = vsub.s32 0, %v167
    %v169 = vrot.slane %v165, %v168
    %v170 = vlaneseq
    %v171 = vshrl.u32 %v170, 7
    %v172 = vsub.s32 1, %v171
    %v173 = vrot.slane %v165, %v172
    %v174 = vlaneseq
    %v175 = vshrl.u32 %v174, 7
    %v176 = vsub.s32 2, %v175
    %v177 = vrot.slane %v165, %v176
    %v178 = vlaneseq
    %v179 = vshrl.u32 %v178, 7
    %v180 = vsub.s32 3, %v179
    %v181 = vrot.slane %v165, %v180
    %vm182 = vcmp.eq.s32.totalorder %v169, 1
    %vm183 = vcmp.eq.s32.totalorder %v173, 1
    %vm184 = vcmp.eq.s32.totalorder %v177, 1
    %vm185 = vcmp.eq.s32.totalorder %v181, 1
    %186 = vrot.lane.b32.xlu0 %v61, 15
    %v187 = vpop.permute.xlu0 %186
    %188 = vrot.lane.b32.xlu0 %v62, 15
    %v189 = vpop.permute.xlu0 %188
    %190 = vrot.lane.b32.xlu0 %v63, 15
    %v191 = vpop.permute.xlu0 %190
    %192 = vrot.lane.b32.xlu0 %v64, 15
    %v193 = vpop.permute.xlu0 %192
    %194 = vrot.lane.b32.xlu0 %v65, 15
    %v195 = vpop.permute.xlu0 %194
    %vm196 = vcmask 121856
    %v197 = vsel %vm196, %v187, %v189
    %v198 = vsel %vm196, %v189, %v191
    %v199 = vsel %vm196, %v191, %v193
    %v200 = vsel %vm196, %v193, %v195
    %v205 = vsel %vm182, %v197, 0.0
    %v206 = vsel %vm183, %v198, 0.0
    %v207 = vsel %vm184, %v199, 0.0
    %v208 = vsel %vm185, %v200, 0.0
    %s209 = scalar_lea.vmem [#allocation3], 3
    %v210 = vld [vmem:[%s209] ss:$8 sm:$0xf]
    %vm211 = vcmp.gt.f32.partialorder %v210, 0.5
    %v212 = vsel %vm211, 1, 0
    %v213 = vlaneseq
    %v214 = vshrl.u32 %v213, 7
    %v215 = vsub.s32 0, %v214
    %v216 = vrot.slane %v212, %v215
    %v217 = vlaneseq
    %v218 = vshrl.u32 %v217, 7
    %v219 = vsub.s32 1, %v218
    %v220 = vrot.slane %v212, %v219
    %v221 = vlaneseq
    %v222 = vshrl.u32 %v221, 7
    %v223 = vsub.s32 2, %v222
    %v224 = vrot.slane %v212, %v223
    %v225 = vlaneseq
    %v226 = vshrl.u32 %v225, 7
    %v227 = vsub.s32 3, %v226
    %v228 = vrot.slane %v212, %v227
    %vm229 = vcmp.eq.s32.totalorder %v216, 1
    %vm230 = vcmp.eq.s32.totalorder %v220, 1
    %vm231 = vcmp.eq.s32.totalorder %v224, 1
    %vm232 = vcmp.eq.s32.totalorder %v228, 1
    %233 = vrot.lane.b32.xlu0 %v61, 1
    %v234 = vpop.permute.xlu0 %233
    %235 = vrot.lane.b32.xlu0 %v62, 1
    %v236 = vpop.permute.xlu0 %235
    %237 = vrot.lane.b32.xlu0 %v63, 1
    %v238 = vpop.permute.xlu0 %237
    %239 = vrot.lane.b32.xlu0 %v64, 1
    %v240 = vpop.permute.xlu0 %239
    %241 = vrot.lane.b32.xlu0 %v65, 1
    %v242 = vpop.permute.xlu0 %241
    %vm243 = vcmask 7168
    %v244 = vsel %vm243, %v234, %v236
    %v245 = vsel %vm243, %v236, %v238
    %v246 = vsel %vm243, %v238, %v240
    %v247 = vsel %vm243, %v240, %v242
    %v252 = vsel %vm229, %v244, 0.0
    %v253 = vsel %vm230, %v245, 0.0
    %v254 = vsel %vm231, %v246, 0.0
    %v255 = vsel %vm232, %v247, 0.0
    %s256 = scalar_lea.vmem [#allocation3], 4
    %v257 = vld [vmem:[%s256] ss:$8 sm:$0xf]
    %vm258 = vcmp.gt.f32.partialorder %v257, 0.5
    %v259 = vsel %vm258, 1, 0
    %v260 = vlaneseq
    %v261 = vshrl.u32 %v260, 7
    %v262 = vsub.s32 0, %v261
    %v263 = vrot.slane %v259, %v262
    %v264 = vlaneseq
    %v265 = vshrl.u32 %v264, 7
    %v266 = vsub.s32 1, %v265
    %v267 = vrot.slane %v259, %v266
    %v268 = vlaneseq
    %v269 = vshrl.u32 %v268, 7
    %v270 = vsub.s32 2, %v269
    %v271 = vrot.slane %v259, %v270
    %v272 = vlaneseq
    %v273 = vshrl.u32 %v272, 7
    %v274 = vsub.s32 3, %v273
    %v275 = vrot.slane %v259, %v274
    %vm276 = vcmp.eq.s32.totalorder %v263, 1
    %vm277 = vcmp.eq.s32.totalorder %v267, 1
    %vm278 = vcmp.eq.s32.totalorder %v271, 1
    %vm279 = vcmp.eq.s32.totalorder %v275, 1
    %v280 = vsel %vm276, %v62, 0.0
    %v281 = vsel %vm277, %v63, 0.0
    %v282 = vsel %vm278, %v64, 0.0
    %v283 = vsel %vm279, %v65, 0.0
    %s284 = scalar_lea.vmem [#allocation3], 5
    %v285 = vld [vmem:[%s284] ss:$8 sm:$0xf]
    %vm286 = vcmp.gt.f32.partialorder %v285, 0.5
    %v287 = vld [vmem:[#allocation2 + $0x8] sm:$0xff]
    %v288 = vld [vmem:[#allocation2 + $0x10] sm:$0xff]
    %v289 = vld [vmem:[#allocation2 + $0x18] sm:$0xff]
    %v290 = vld [vmem:[#allocation2 + $0x20] sm:$0xff]
    %v291 = vld [vmem:[#allocation2 + $0x28] sm:$0xff]
    %v292 = vsel %vm286, 1, 0
    %v293 = vlaneseq
    %v294 = vshrl.u32 %v293, 7
    %v295 = vsub.s32 0, %v294
    %v296 = vrot.slane %v292, %v295
    %v297 = vlaneseq
    %v298 = vshrl.u32 %v297, 7
    %v299 = vsub.s32 1, %v298
    %v300 = vrot.slane %v292, %v299
    %v301 = vlaneseq
    %v302 = vshrl.u32 %v301, 7
    %v303 = vsub.s32 2, %v302
    %v304 = vrot.slane %v292, %v303
    %v305 = vlaneseq
    %v306 = vshrl.u32 %v305, 7
    %v307 = vsub.s32 3, %v306
    %v308 = vrot.slane %v292, %v307
    %vm309 = vcmp.eq.s32.totalorder %v296, 1
    %vm310 = vcmp.eq.s32.totalorder %v300, 1
    %vm311 = vcmp.eq.s32.totalorder %v304, 1
    %vm312 = vcmp.eq.s32.totalorder %v308, 1
    %318 = vrot.lane.b32.xlu0 %v287, 127
    %v319 = vpop.permute.xlu0 %318
    %320 = vrot.lane.b32.xlu0 %v288, 127
    %v321 = vpop.permute.xlu0 %320
    %322 = vrot.lane.b32.xlu0 %v289, 127
    %v323 = vpop.permute.xlu0 %322
    %324 = vrot.lane.b32.xlu0 %v290, 127
    %v325 = vpop.permute.xlu0 %324
    %326 = vrot.lane.b32.xlu0 %v291, 127
    %v327 = vpop.permute.xlu0 %326
    %vm328 = vcmask 1039360
    %v329 = vsel %vm328, %v319, %v321
    %v330 = vsel %vm328, %v321, %v323
    %v331 = vsel %vm328, %v323, %v325
    %v332 = vsel %vm328, %v325, %v327
    %v337 = vsel %vm309, %v329, 0.0
    %v338 = vsel %vm310, %v330, 0.0
    %v339 = vsel %vm311, %v331, 0.0
    %v340 = vsel %vm312, %v332, 0.0
    %s341 = scalar_lea.vmem [#allocation3], 6
    %v342 = vld [vmem:[%s341] ss:$8 sm:$0xf]
    %vm343 = vcmp.gt.f32.partialorder %v342, 0.5
    %v344 = vsel %vm343, 1, 0
    %v345 = vlaneseq
    %v346 = vshrl.u32 %v345, 7
    %v347 = vsub.s32 0, %v346
    %v348 = vrot.slane %v344, %v347
    %v349 = vlaneseq
    %v350 = vshrl.u32 %v349, 7
    %v351 = vsub.s32 1, %v350
    %v352 = vrot.slane %v344, %v351
    %v353 = vlaneseq
    %v354 = vshrl.u32 %v353, 7
    %v355 = vsub.s32 2, %v354
    %v356 = vrot.slane %v344, %v355
    %v357 = vlaneseq
    %v358 = vshrl.u32 %v357, 7
    %v359 = vsub.s32 3, %v358
    %v360 = vrot.slane %v344, %v359
    %vm361 = vcmp.eq.s32.totalorder %v348, 1
    %vm362 = vcmp.eq.s32.totalorder %v352, 1
    %vm363 = vcmp.eq.s32.totalorder %v356, 1
    %vm364 = vcmp.eq.s32.totalorder %v360, 1
    %365 = vrot.lane.b32.xlu0 %v287, 113
    %v366 = vpop.permute.xlu0 %365
    %367 = vrot.lane.b32.xlu0 %v288, 113
    %v368 = vpop.permute.xlu0 %367
    %369 = vrot.lane.b32.xlu0 %v289, 113
    %v370 = vpop.permute.xlu0 %369
    %371 = vrot.lane.b32.xlu0 %v290, 113
    %v372 = vpop.permute.xlu0 %371
    %373 = vrot.lane.b32.xlu0 %v291, 113
    %v374 = vpop.permute.xlu0 %373
    %vm375 = vcmask 924672
    %v376 = vsel %vm375, %v366, %v368
    %v377 = vsel %vm375, %v368, %v370
    %v378 = vsel %vm375, %v370, %v372
    %v379 = vsel %vm375, %v372, %v374
    %v384 = vsel %vm361, %v376, 0.0
    %v385 = vsel %vm362, %v377, 0.0
    %v386 = vsel %vm363, %v378, 0.0
    %v387 = vsel %vm364, %v379, 0.0
    %s388 = scalar_lea.vmem [#allocation3], 7
    %v389 = vld [vmem:[%s388] ss:$8 sm:$0xf]
    %vm390 = vcmp.gt.f32.partialorder %v389, 0.5
    %v391 = vsel %vm390, 1, 0
    %v392 = vlaneseq
    %v393 = vshrl.u32 %v392, 7
    %v394 = vsub.s32 0, %v393
    %v395 = vrot.slane %v391, %v394
    %v396 = vlaneseq
    %v397 = vshrl.u32 %v396, 7
    %v398 = vsub.s32 1, %v397
    %v399 = vrot.slane %v391, %v398
    %v400 = vlaneseq
    %v401 = vshrl.u32 %v400, 7
    %v402 = vsub.s32 2, %v401
    %v403 = vrot.slane %v391, %v402
    %v404 = vlaneseq
    %v405 = vshrl.u32 %v404, 7
    %v406 = vsub.s32 3, %v405
    %v407 = vrot.slane %v391, %v406
    %vm408 = vcmp.eq.s32.totalorder %v395, 1
    %vm409 = vcmp.eq.s32.totalorder %v399, 1
    %vm410 = vcmp.eq.s32.totalorder %v403, 1
    %vm411 = vcmp.eq.s32.totalorder %v407, 1
    %412 = vrot.lane.b32.xlu0 %v287, 112
    %v413 = vpop.permute.xlu0 %412
    %414 = vrot.lane.b32.xlu0 %v288, 112
    %v415 = vpop.permute.xlu0 %414
    %416 = vrot.lane.b32.xlu0 %v289, 112
    %v417 = vpop.permute.xlu0 %416
    %418 = vrot.lane.b32.xlu0 %v290, 112
    %v419 = vpop.permute.xlu0 %418
    %420 = vrot.lane.b32.xlu0 %v291, 112
    %v421 = vpop.permute.xlu0 %420
    %vm422 = vcmask 916480
    %v423 = vsel %vm422, %v413, %v415
    %v424 = vsel %vm422, %v415, %v417
    %v425 = vsel %vm422, %v417, %v419
    %v426 = vsel %vm422, %v419, %v421
    %v431 = vsel %vm408, %v423, 0.0
    %v432 = vsel %vm409, %v424, 0.0
    %v433 = vsel %vm410, %v425, 0.0
    %v434 = vsel %vm411, %v426, 0.0
    %s435 = scalar_lea.vmem [#allocation3], 32
    %v436 = vld [vmem:[%s435] ss:$8 sm:$0xf]
    %vm437 = vcmp.gt.f32.partialorder %v436, 0.5
    %v438 = vsel %vm437, 1, 0
    %v439 = vlaneseq
    %v440 = vshrl.u32 %v439, 7
    %v441 = vsub.s32 0, %v440
    %v442 = vrot.slane %v438, %v441
    %v443 = vlaneseq
    %v444 = vshrl.u32 %v443, 7
    %v445 = vsub.s32 1, %v444
    %v446 = vrot.slane %v438, %v445
    %v447 = vlaneseq
    %v448 = vshrl.u32 %v447, 7
    %v449 = vsub.s32 2, %v448
    %v450 = vrot.slane %v438, %v449
    %v451 = vlaneseq
    %v452 = vshrl.u32 %v451, 7
    %v453 = vsub.s32 3, %v452
    %v454 = vrot.slane %v438, %v453
    %vm455 = vcmp.eq.s32.totalorder %v442, 1
    %vm456 = vcmp.eq.s32.totalorder %v446, 1
    %vm457 = vcmp.eq.s32.totalorder %v450, 1
    %vm458 = vcmp.eq.s32.totalorder %v454, 1
    %459 = vrot.lane.b32.xlu0 %v287, 111
    %v460 = vpop.permute.xlu0 %459
    %461 = vrot.lane.b32.xlu0 %v288, 111
    %v462 = vpop.permute.xlu0 %461
    %463 = vrot.lane.b32.xlu0 %v289, 111
    %v464 = vpop.permute.xlu0 %463
    %465 = vrot.lane.b32.xlu0 %v290, 111
    %v466 = vpop.permute.xlu0 %465
    %467 = vrot.lane.b32.xlu0 %v291, 111
    %v468 = vpop.permute.xlu0 %467
    %vm469 = vcmask 908288
    %v470 = vsel %vm469, %v460, %v462
    %v471 = vsel %vm469, %v462, %v464
    %v472 = vsel %vm469, %v464, %v466
    %v473 = vsel %vm469, %v466, %v468
    %v478 = vsel %vm455, %v470, 0.0
    %v479 = vsel %vm456, %v471, 0.0
    %v480 = vsel %vm457, %v472, 0.0
    %v481 = vsel %vm458, %v473, 0.0
    %v482 = vld [vmem:[%s2] sm:$0xff]
    %v483 = vld [vmem:[%s2 + $0x8] sm:$0xff]
    %v484 = vpack.c.bf16 %v158, %v111
    %v485 = vpack.c.bf16 %v159, %v112
    %v486 = vpack.c.bf16 %v160, %v113
    %v487 = vpack.c.bf16 %v161, %v114
    %v488 = vpack.c.bf16 %v252, %v205
    %v489 = vpack.c.bf16 %v253, %v206
    %v490 = vpack.c.bf16 %v254, %v207
    %v491 = vpack.c.bf16 %v255, %v208
    %v492 = vpack.c.bf16 %v337, %v280
    %v493 = vpack.c.bf16 %v338, %v281
    %v494 = vpack.c.bf16 %v339, %v282
    %v495 = vpack.c.bf16 %v340, %v283
    %v496 = vpack.c.bf16 %v431, %v384
    %v497 = vpack.c.bf16 %v432, %v385
    %v498 = vpack.c.bf16 %v433, %v386
    %v499 = vpack.c.bf16 %v434, %v387
    %v500 = vpack.c.bf16 %v478, %v478
    %v501 = vpack.c.bf16 %v479, %v479
    %v502 = vpack.c.bf16 %v480, %v480
    %v503 = vpack.c.bf16 %v481, %v481
    %v504 = vpack.c.bf16 %v483, %v482
    %vm505 = vcmask 588800
    %v507 = vsel %vm505, %v504, 0
    %vm509 = vcmask 1043456
    %v511 = vsel %vm509, %v500, 0
    %v514 = vsel %vm509, %v501, 0
    %v517 = vsel %vm509, %v502, 0
    %v520 = vsel %vm509, %v503, 0
    %522 = vmatprep.subr.bf16.mxu0 %v485
    %523 = vmatpush1.bf16.msra.mxu0 %v484
    %524 = vmatprep.subr.bf16.mxu0 %v489
    %525 = vmatpush1.bf16.msra.mxu0 %v488
    %526 = vmatprep.subr.bf16.mxu0 %v493
    %527 = vmatpush1.bf16.msra.mxu0 %v492
    %528 = vmatprep.subr.bf16.mxu0 %v497
    %529 = vmatpush1.bf16.msra.mxu0 %v496
    %530 = vmatprep.subr.bf16.mxu0 %v514
    %531 = vmatpush1.bf16.msra.mxu0 %v511
    %532 = vmatprep.subr.bf16.mxu0 0
    %533 = vmatpush1.bf16.msra.mxu0 0
    %534 = vmatprep.subr.bf16.mxu0 0
    %535 = vmatpush1.bf16.msra.mxu0 0
    %536 = vmatprep.subr.bf16.mxu0 0
    %537 = vmatpush1.bf16.msra.mxu0 0
    %538 = vmatprep.subr.bf16.mxu0 0
    %539 = vmatpush1.bf16.msra.mxu0 0
    %540 = vmatprep.subr.bf16.mxu0 0
    %541 = vmatpush1.bf16.msra.mxu0 0
    %542 = vmatprep.subr.bf16.mxu0 0
    %543 = vmatpush1.bf16.msra.mxu0 0
    %544 = vmatprep.subr.bf16.mxu0 0
    %545 = vmatpush1.bf16.msra.mxu0 0
    %546 = vmatprep.subr.bf16.mxu0 0
    %547 = vmatpush1.bf16.msra.mxu0 0
    %548 = vmatprep.subr.bf16.mxu0 0
    %549 = vmatpush1.bf16.msra.mxu0 0
    %550 = vmatprep.subr.bf16.mxu0 0
    %551 = vmatpush1.bf16.msra.mxu0 0
    %552 = vmatprep.subr.bf16.mxu0 0
    %553 = vmatpush1.bf16.msra.mxu0 0
    %554 = vmatprep.mubr.bf16.mxu0 0
    %555 = vmatmul.mubr.bf16.gmra.mrb[0].mxu0 %v507
    %v556 = vpop.f32.mrb[0].mxu0
    %v557 = vadd.f32 0.0, %v556
    %v558 = vpop.f32.mrb[0].mxu0
    %v559 = vadd.f32 0.0, %v558
    %v560 = vpop.f32.mrb[0].mxu0
    %v561 = vadd.f32 0.0, %v560
    %v562 = vpop.f32.mrb[0].mxu0
    %v563 = vadd.f32 0.0, %v562
    %564 = vdwg.mxu0
    %565 = vmatprep.subr.bf16.mxu0 %v487
    %566 = vmatpush1.bf16.msra.mxu0 %v486
    %567 = vmatprep.subr.bf16.mxu0 %v491
    %568 = vmatpush1.bf16.msra.mxu0 %v490
    %569 = vmatprep.subr.bf16.mxu0 %v495
    %570 = vmatpush1.bf16.msra.mxu0 %v494
    %571 = vmatprep.subr.bf16.mxu0 %v499
    %572 = vmatpush1.bf16.msra.mxu0 %v498
    %573 = vmatprep.subr.bf16.mxu0 %v520
    %574 = vmatpush1.bf16.msra.mxu0 %v517
    %575 = vmatprep.subr.bf16.mxu0 0
    %576 = vmatpush1.bf16.msra.mxu0 0
    %577 = vmatprep.subr.bf16.mxu0 0
    %578 = vmatpush1.bf16.msra.mxu0 0
    %579 = vmatprep.subr.bf16.mxu0 0
    %580 = vmatpush1.bf16.msra.mxu0 0
    %581 = vmatprep.subr.bf16.mxu0 0
    %582 = vmatpush1.bf16.msra.mxu0 0
    %583 = vmatprep.subr.bf16.mxu0 0
    %584 = vmatpush1.bf16.msra.mxu0 0
    %585 = vmatprep.subr.bf16.mxu0 0
    %586 = vmatpush1.bf16.msra.mxu0 0
    %587 = vmatprep.subr.bf16.mxu0 0
    %588 = vmatpush1.bf16.msra.mxu0 0
    %589 = vmatprep.subr.bf16.mxu0 0
    %590 = vmatpush1.bf16.msra.mxu0 0
    %591 = vmatprep.subr.bf16.mxu0 0
    %592 = vmatpush1.bf16.msra.mxu0 0
    %593 = vmatprep.subr.bf16.mxu0 0
    %594 = vmatpush1.bf16.msra.mxu0 0
    %595 = vmatprep.subr.bf16.mxu0 0
    %596 = vmatpush1.bf16.msra.mxu0 0
    %597 = vmatprep.mubr.bf16.mxu0 0
    %598 = vmatmul.mubr.bf16.gmra.mrb[0].mxu0 %v507
    %v599 = vpop.f32.mrb[0].mxu0
    %v600 = vadd.f32 0.0, %v599
    %v601 = vpop.f32.mrb[0].mxu0
    %v602 = vadd.f32 0.0, %v601
    %v603 = vpop.f32.mrb[0].mxu0
    %v604 = vadd.f32 0.0, %v603
    %v605 = vpop.f32.mrb[0].mxu0
    %v606 = vadd.f32 0.0, %v605
    %607 = vdwg.mxu0
    %v608 = vld [vmem:[%s3] sm:$0xff]
    %610 = vset.pattern.permute.xlu0 0
    %611 = vperm.xlu0 %610, %v608
    %v612 = vpop.permute.xlu0 %611
    %v614 = vadd.f32 %v557, %v612
    %v615 = vadd.f32 %v559, %v612
    %v616 = vadd.f32 %v600, %v612
    %v617 = vadd.f32 %v602, %v612
    %v618 = vld [vmem:[%s4] sm:$0xff]
    %v619 = vld [vmem:[%s5] sm:$0xff]
    %v620 = vadd.f32 %v614, %v615
    %v621 = vadd.f32 %v620, %v616
    %v622 = vadd.f32 %v621, %v617
    %623 = vadd.xlane.f32.xlu0 %v622
    %v624 = vpop.xlane.xlu0 %623
    %v625 = vmul.f32 %v624, 0.001953125
    %v626 = vmul.f32 %v614, %v614
    %v627 = vmul.f32 %v615, %v615
    %v628 = vmul.f32 %v616, %v616
    %v629 = vmul.f32 %v617, %v617
    %v630 = vadd.f32 %v626, %v627
    %v631 = vadd.f32 %v630, %v628
    %v632 = vadd.f32 %v631, %v629
    %633 = vadd.xlane.f32.xlu0 %v632
    %v634 = vpop.xlane.xlu0 %633
    %v635 = vmul.f32 %v634, 0.001953125
    %v636 = vmul.f32 %v625, %v625
    %v637 = vsub.f32 %v635, %v636
    %v638 = vadd.f32 %v637, 1e-05
    %v639 = vrsqrt.pop %v638
    %v640 = vmul.f32 %v618, %v639
    %v641 = vmul.f32 %v625, %v640
    %v642 = vsub.f32 %v619, %v641
    %644 = vset.pattern.permute.xlu0 0
    %645 = vperm.xlu0 %644, %v640
    %v646 = vpop.permute.xlu0 %645
    %v648 = vmul.f32 %v614, %v646
    %v649 = vmul.f32 %v615, %v646
    %v650 = vmul.f32 %v616, %v646
    %v651 = vmul.f32 %v617, %v646
    %653 = vset.pattern.permute.xlu0 0
    %654 = vperm.xlu0 %653, %v642
    %v655 = vpop.permute.xlu0 %654
    %v657 = vadd.f32 %v648, %v655
    %v658 = vadd.f32 %v649, %v655
    %v659 = vadd.f32 %v650, %v655
    %v660 = vadd.f32 %v651, %v655
    %v661 = vmax.f32 %v657, 0.0
    %v662 = vmax.f32 %v658, 0.0
    %v663 = vmax.f32 %v659, 0.0
    %v664 = vmax.f32 %v660, 0.0
    %665 = vst [vmem:[#allocation2 + $0x8] sm:$0xff] %v661
    %666 = vst [vmem:[#allocation2 + $0x10] sm:$0xff] %v662
    %667 = vst [vmem:[#allocation2 + $0x18] sm:$0xff] %v663
    %668 = vst [vmem:[#allocation2 + $0x20] sm:$0xff] %v664
    %v669 = vld [vmem:[#allocation3] ss:$8 sm:$0xf]
    %vm670 = vcmp.gt.f32.partialorder %v669, 0.5
    %v671 = vld [vmem:[#allocation2] sm:$0xff]
    %v672 = vld [vmem:[#allocation2 + $0x8] sm:$0xff]
    %v673 = vld [vmem:[#allocation2 + $0x10] sm:$0xff]
    %v674 = vld [vmem:[#allocation2 + $0x18] sm:$0xff]
    %v675 = vld [vmem:[#allocation2 + $0x20] sm:$0xff]
    %v676 = vsel %vm670, 1, 0
    %v677 = vlaneseq
    %v678 = vshrl.u32 %v677, 7
    %v679 = vsub.s32 0, %v678
    %v680 = vrot.slane %v676, %v679
    %v681 = vlaneseq
    %v682 = vshrl.u32 %v681, 7
    %v683 = vsub.s32 1, %v682
    %v684 = vrot.slane %v676, %v683
    %v685 = vlaneseq
    %v686 = vshrl.u32 %v685, 7
    %v687 = vsub.s32 2, %v686
    %v688 = vrot.slane %v676, %v687
    %v689 = vlaneseq
    %v690 = vshrl.u32 %v689, 7
    %v691 = vsub.s32 3, %v690
    %v692 = vrot.slane %v676, %v691
    %vm693 = vcmp.eq.s32.totalorder %v680, 1
    %vm694 = vcmp.eq.s32.totalorder %v684, 1
    %vm695 = vcmp.eq.s32.totalorder %v688, 1
    %vm696 = vcmp.eq.s32.totalorder %v692, 1
    %702 = vrot.lane.b32.xlu0 %v671, 17
    %v703 = vpop.permute.xlu0 %702
    %704 = vrot.lane.b32.xlu0 %v672, 17
    %v705 = vpop.permute.xlu0 %704
    %706 = vrot.lane.b32.xlu0 %v673, 17
    %v707 = vpop.permute.xlu0 %706
    %708 = vrot.lane.b32.xlu0 %v674, 17
    %v709 = vpop.permute.xlu0 %708
    %710 = vrot.lane.b32.xlu0 %v675, 17
    %v711 = vpop.permute.xlu0 %710
    %v712 = vsel %vm102, %v703, %v705
    %v713 = vsel %vm102, %v705, %v707
    %v714 = vsel %vm102, %v707, %v709
    %v715 = vsel %vm102, %v709, %v711
    %v720 = vsel %vm693, %v712, 0.0
    %v721 = vsel %vm694, %v713, 0.0
    %v722 = vsel %vm695, %v714, 0.0
    %v723 = vsel %vm696, %v715, 0.0
    %v724 = vld [vmem:[%s115] ss:$8 sm:$0xf]
    %vm725 = vcmp.gt.f32.partialorder %v724, 0.5
    %v726 = vsel %vm725, 1, 0
    %v727 = vlaneseq
    %v728 = vshrl.u32 %v727, 7
    %v729 = vsub.s32 0, %v728
    %v730 = vrot.slane %v726, %v729
    %v731 = vlaneseq
    %v732 = vshrl.u32 %v731, 7
    %v733 = vsub.s32 1, %v732
    %v734 = vrot.slane %v726, %v733
    %v735 = vlaneseq
    %v736 = vshrl.u32 %v735, 7
    %v737 = vsub.s32 2, %v736
    %v738 = vrot.slane %v726, %v737
    %v739 = vlaneseq
    %v740 = vshrl.u32 %v739, 7
    %v741 = vsub.s32 3, %v740
    %v742 = vrot.slane %v726, %v741
    %vm743 = vcmp.eq.s32.totalorder %v730, 1
    %vm744 = vcmp.eq.s32.totalorder %v734, 1
    %vm745 = vcmp.eq.s32.totalorder %v738, 1
    %vm746 = vcmp.eq.s32.totalorder %v742, 1
    %747 = vrot.lane.b32.xlu0 %v671, 16
    %v748 = vpop.permute.xlu0 %747
    %749 = vrot.lane.b32.xlu0 %v672, 16
    %v750 = vpop.permute.xlu0 %749
    %751 = vrot.lane.b32.xlu0 %v673, 16
    %v752 = vpop.permute.xlu0 %751
    %753 = vrot.lane.b32.xlu0 %v674, 16
    %v754 = vpop.permute.xlu0 %753
    %755 = vrot.lane.b32.xlu0 %v675, 16
    %v756 = vpop.permute.xlu0 %755
    %v757 = vsel %vm149, %v748, %v750
    %v758 = vsel %vm149, %v750, %v752
    %v759 = vsel %vm149, %v752, %v754
    %v760 = vsel %vm149, %v754, %v756
    %v765 = vsel %vm743, %v757, 0.0
    %v766 = vsel %vm744, %v758, 0.0
    %v767 = vsel %vm745, %v759, 0.0
    %v768 = vsel %vm746, %v760, 0.0
    %v769 = vld [vmem:[%s162] ss:$8 sm:$0xf]
    %vm770 = vcmp.gt.f32.partialorder %v769, 0.5
    %v771 = vsel %vm770, 1, 0
    %v772 = vlaneseq
    %v773 = vshrl.u32 %v772, 7
    %v774 = vsub.s32 0, %v773
    %v775 = vrot.slane %v771, %v774
    %v776 = vlaneseq
    %v777 = vshrl.u32 %v776, 7
    %v778 = vsub.s32 1, %v777
    %v779 = vrot.slane %v771, %v778
    %v780 = vlaneseq
    %v781 = vshrl.u32 %v780, 7
    %v782 = vsub.s32 2, %v781
    %v783 = vrot.slane %v771, %v782
    %v784 = vlaneseq
    %v785 = vshrl.u32 %v784, 7
    %v786 = vsub.s32 3, %v785
    %v787 = vrot.slane %v771, %v786
    %vm788 = vcmp.eq.s32.totalorder %v775, 1
    %vm789 = vcmp.eq.s32.totalorder %v779, 1
    %vm790 = vcmp.eq.s32.totalorder %v783, 1
    %vm791 = vcmp.eq.s32.totalorder %v787, 1
    %792 = vrot.lane.b32.xlu0 %v671, 15
    %v793 = vpop.permute.xlu0 %792
    %794 = vrot.lane.b32.xlu0 %v672, 15
    %v795 = vpop.permute.xlu0 %794
    %796 = vrot.lane.b32.xlu0 %v673, 15
    %v797 = vpop.permute.xlu0 %796
    %798 = vrot.lane.b32.xlu0 %v674, 15
    %v799 = vpop.permute.xlu0 %798
    %800 = vrot.lane.b32.xlu0 %v675, 15
    %v801 = vpop.permute.xlu0 %800
    %v802 = vsel %vm196, %v793, %v795
    %v803 = vsel %vm196, %v795, %v797
    %v804 = vsel %vm196, %v797, %v799
    %v805 = vsel %vm196, %v799, %v801
    %v810 = vsel %vm788, %v802, 0.0
    %v811 = vsel %vm789, %v803, 0.0
    %v812 = vsel %vm790, %v804, 0.0
    %v813 = vsel %vm791, %v805, 0.0
    %v814 = vld [vmem:[%s209] ss:$8 sm:$0xf]
    %vm815 = vcmp.gt.f32.partialorder %v814, 0.5
    %v816 = vsel %vm815, 1, 0
    %v817 = vlaneseq
    %v818 = vshrl.u32 %v817, 7
    %v819 = vsub.s32 0, %v818
    %v820 = vrot.slane %v816, %v819
    %v821 = vlaneseq
    %v822 = vshrl.u32 %v821, 7
    %v823 = vsub.s32 1, %v822
    %v824 = vrot.slane %v816, %v823
    %v825 = vlaneseq
    %v826 = vshrl.u32 %v825, 7
    %v827 = vsub.s32 2, %v826
    %v828 = vrot.slane %v816, %v827
    %v829 = vlaneseq
    %v830 = vshrl.u32 %v829, 7
    %v831 = vsub.s32 3, %v830
    %v832 = vrot.slane %v816, %v831
    %vm833 = vcmp.eq.s32.totalorder %v820, 1
    %vm834 = vcmp.eq.s32.totalorder %v824, 1
    %vm835 = vcmp.eq.s32.totalorder %v828, 1
    %vm836 = vcmp.eq.s32.totalorder %v832, 1
    %837 = vrot.lane.b32.xlu0 %v671, 1
    %v838 = vpop.permute.xlu0 %837
    %839 = vrot.lane.b32.xlu0 %v672, 1
    %v840 = vpop.permute.xlu0 %839
    %841 = vrot.lane.b32.xlu0 %v673, 1
    %v842 = vpop.permute.xlu0 %841
    %843 = vrot.lane.b32.xlu0 %v674, 1
    %v844 = vpop.permute.xlu0 %843
    %845 = vrot.lane.b32.xlu0 %v675, 1
    %v846 = vpop.permute.xlu0 %845
    %v847 = vsel %vm243, %v838, %v840
    %v848 = vsel %vm243, %v840, %v842
    %v849 = vsel %vm243, %v842, %v844
    %v850 = vsel %vm243, %v844, %v846
    %v855 = vsel %vm833, %v847, 0.0
    %v856 = vsel %vm834, %v848, 0.0
    %v857 = vsel %vm835, %v849, 0.0
    %v858 = vsel %vm836, %v850, 0.0
    %v859 = vld [vmem:[%s256] ss:$8 sm:$0xf]
    %vm860 = vcmp.gt.f32.partialorder %v859, 0.5
    %v861 = vsel %vm860, 1, 0
    %v862 = vlaneseq
    %v863 = vshrl.u32 %v862, 7
    %v864 = vsub.s32 0, %v863
    %v865 = vrot.slane %v861, %v864
    %v866 = vlaneseq
    %v867 = vshrl.u32 %v866, 7
    %v868 = vsub.s32 1, %v867
    %v869 = vrot.slane %v861, %v868
    %v870 = vlaneseq
    %v871 = vshrl.u32 %v870, 7
    %v872 = vsub.s32 2, %v871
    %v873 = vrot.slane %v861, %v872
    %v874 = vlaneseq
    %v875 = vshrl.u32 %v874, 7
    %v876 = vsub.s32 3, %v875
    %v877 = vrot.slane %v861, %v876
    %vm878 = vcmp.eq.s32.totalorder %v865, 1
    %vm879 = vcmp.eq.s32.totalorder %v869, 1
    %vm880 = vcmp.eq.s32.totalorder %v873, 1
    %vm881 = vcmp.eq.s32.totalorder %v877, 1
    %v882 = vsel %vm878, %v672, 0.0
    %v883 = vsel %vm879, %v673, 0.0
    %v884 = vsel %vm880, %v674, 0.0
    %v885 = vsel %vm881, %v675, 0.0
    %v886 = vld [vmem:[%s284] ss:$8 sm:$0xf]
    %vm887 = vcmp.gt.f32.partialorder %v886, 0.5
    %v888 = vld [vmem:[#allocation2 + $0x8] sm:$0xff]
    %v889 = vld [vmem:[#allocation2 + $0x10] sm:$0xff]
    %v890 = vld [vmem:[#allocation2 + $0x18] sm:$0xff]
    %v891 = vld [vmem:[#allocation2 + $0x20] sm:$0xff]
    %v892 = vld [vmem:[#allocation2 + $0x28] sm:$0xff]
    %v893 = vsel %vm887, 1, 0
    %v894 = vlaneseq
    %v895 = vshrl.u32 %v894, 7
    %v896 = vsub.s32 0, %v895
    %v897 = vrot.slane %v893, %v896
    %v898 = vlaneseq
    %v899 = vshrl.u32 %v898, 7
    %v900 = vsub.s32 1, %v899
    %v901 = vrot.slane %v893, %v900
    %v902 = vlaneseq
    %v903 = vshrl.u32 %v902, 7
    %v904 = vsub.s32 2, %v903
    %v905 = vrot.slane %v893, %v904
    %v906 = vlaneseq
    %v907 = vshrl.u32 %v906, 7
    %v908 = vsub.s32 3, %v907
    %v909 = vrot.slane %v893, %v908
    %vm910 = vcmp.eq.s32.totalorder %v897, 1
    %vm911 = vcmp.eq.s32.totalorder %v901, 1
    %vm912 = vcmp.eq.s32.totalorder %v905, 1
    %vm913 = vcmp.eq.s32.totalorder %v909, 1
    %919 = vrot.lane.b32.xlu0 %v888, 127
    %v920 = vpop.permute.xlu0 %919
    %921 = vrot.lane.b32.xlu0 %v889, 127
    %v922 = vpop.permute.xlu0 %921
    %923 = vrot.lane.b32.xlu0 %v890, 127
    %v924 = vpop.permute.xlu0 %923
    %925 = vrot.lane.b32.xlu0 %v891, 127
    %v926 = vpop.permute.xlu0 %925
    %927 = vrot.lane.b32.xlu0 %v892, 127
    %v928 = vpop.permute.xlu0 %927
    %v929 = vsel %vm328, %v920, %v922
    %v930 = vsel %vm328, %v922, %v924
    %v931 = vsel %vm328, %v924, %v926
    %v932 = vsel %vm328, %v926, %v928
    %v937 = vsel %vm910, %v929, 0.0
    %v938 = vsel %vm911, %v930, 0.0
    %v939 = vsel %vm912, %v931, 0.0
    %v940 = vsel %vm913, %v932, 0.0
    %v941 = vld [vmem:[%s341] ss:$8 sm:$0xf]
    %vm942 = vcmp.gt.f32.partialorder %v941, 0.5
    %v943 = vsel %vm942, 1, 0
    %v944 = vlaneseq
    %v945 = vshrl.u32 %v944, 7
    %v946 = vsub.s32 0, %v945
    %v947 = vrot.slane %v943, %v946
    %v948 = vlaneseq
    %v949 = vshrl.u32 %v948, 7
    %v950 = vsub.s32 1, %v949
    %v951 = vrot.slane %v943, %v950
    %v952 = vlaneseq
    %v953 = vshrl.u32 %v952, 7
    %v954 = vsub.s32 2, %v953
    %v955 = vrot.slane %v943, %v954
    %v956 = vlaneseq
    %v957 = vshrl.u32 %v956, 7
    %v958 = vsub.s32 3, %v957
    %v959 = vrot.slane %v943, %v958
    %vm960 = vcmp.eq.s32.totalorder %v947, 1
    %vm961 = vcmp.eq.s32.totalorder %v951, 1
    %vm962 = vcmp.eq.s32.totalorder %v955, 1
    %vm963 = vcmp.eq.s32.totalorder %v959, 1
    %964 = vrot.lane.b32.xlu0 %v888, 113
    %v965 = vpop.permute.xlu0 %964
    %966 = vrot.lane.b32.xlu0 %v889, 113
    %v967 = vpop.permute.xlu0 %966
    %968 = vrot.lane.b32.xlu0 %v890, 113
    %v969 = vpop.permute.xlu0 %968
    %970 = vrot.lane.b32.xlu0 %v891, 113
    %v971 = vpop.permute.xlu0 %970
    %972 = vrot.lane.b32.xlu0 %v892, 113
    %v973 = vpop.permute.xlu0 %972
    %v974 = vsel %vm375, %v965, %v967
    %v975 = vsel %vm375, %v967, %v969
    %v976 = vsel %vm375, %v969, %v971
    %v977 = vsel %vm375, %v971, %v973
    %v982 = vsel %vm960, %v974, 0.0
    %v983 = vsel %vm961, %v975, 0.0
    %v984 = vsel %vm962, %v976, 0.0
    %v985 = vsel %vm963, %v977, 0.0
    %v986 = vld [vmem:[%s388] ss:$8 sm:$0xf]
    %vm987 = vcmp.gt.f32.partialorder %v986, 0.5
    %v988 = vsel %vm987, 1, 0
    %v989 = vlaneseq
    %v990 = vshrl.u32 %v989, 7
    %v991 = vsub.s32 0, %v990
    %v992 = vrot.slane %v988, %v991
    %v993 = vlaneseq
    %v994 = vshrl.u32 %v993, 7
    %v995 = vsub.s32 1, %v994
    %v996 = vrot.slane %v988, %v995
    %v997 = vlaneseq
    %v998 = vshrl.u32 %v997, 7
    %v999 = vsub.s32 2, %v998
    %v1000 = vrot.slane %v988, %v999
    %v1001 = vlaneseq
    %v1002 = vshrl.u32 %v1001, 7
    %v1003 = vsub.s32 3, %v1002
    %v1004 = vrot.slane %v988, %v1003
    %vm1005 = vcmp.eq.s32.totalorder %v992, 1
    %vm1006 = vcmp.eq.s32.totalorder %v996, 1
    %vm1007 = vcmp.eq.s32.totalorder %v1000, 1
    %vm1008 = vcmp.eq.s32.totalorder %v1004, 1
    %1009 = vrot.lane.b32.xlu0 %v888, 112
    %v1010 = vpop.permute.xlu0 %1009
    %1011 = vrot.lane.b32.xlu0 %v889, 112
    %v1012 = vpop.permute.xlu0 %1011
    %1013 = vrot.lane.b32.xlu0 %v890, 112
    %v1014 = vpop.permute.xlu0 %1013
    %1015 = vrot.lane.b32.xlu0 %v891, 112
    %v1016 = vpop.permute.xlu0 %1015
    %1017 = vrot.lane.b32.xlu0 %v892, 112
    %v1018 = vpop.permute.xlu0 %1017
    %v1019 = vsel %vm422, %v1010, %v1012
    %v1020 = vsel %vm422, %v1012, %v1014
    %v1021 = vsel %vm422, %v1014, %v1016
    %v1022 = vsel %vm422, %v1016, %v1018
    %v1027 = vsel %vm1005, %v1019, 0.0
    %v1028 = vsel %vm1006, %v1020, 0.0
    %v1029 = vsel %vm1007, %v1021, 0.0
    %v1030 = vsel %vm1008, %v1022, 0.0
    %v1031 = vld [vmem:[%s435] ss:$8 sm:$0xf]
    %vm1032 = vcmp.gt.f32.partialorder %v1031, 0.5
    %v1033 = vsel %vm1032, 1, 0
    %v1034 = vlaneseq
    %v1035 = vshrl.u32 %v1034, 7
    %v1036 = vsub.s32 0, %v1035
    %v1037 = vrot.slane %v1033, %v1036
    %v1038 = vlaneseq
    %v1039 = vshrl.u32 %v1038, 7
    %v1040 = vsub.s32 1, %v1039
    %v1041 = vrot.slane %v1033, %v1040
    %v1042 = vlaneseq
    %v1043 = vshrl.u32 %v1042, 7
    %v1044 = vsub.s32 2, %v1043
    %v1045 = vrot.slane %v1033, %v1044
    %v1046 = vlaneseq
    %v1047 = vshrl.u32 %v1046, 7
    %v1048 = vsub.s32 3, %v1047
    %v1049 = vrot.slane %v1033, %v1048
    %vm1050 = vcmp.eq.s32.totalorder %v1037, 1
    %vm1051 = vcmp.eq.s32.totalorder %v1041, 1
    %vm1052 = vcmp.eq.s32.totalorder %v1045, 1
    %vm1053 = vcmp.eq.s32.totalorder %v1049, 1
    %1054 = vrot.lane.b32.xlu0 %v888, 111
    %v1055 = vpop.permute.xlu0 %1054
    %1056 = vrot.lane.b32.xlu0 %v889, 111
    %v1057 = vpop.permute.xlu0 %1056
    %1058 = vrot.lane.b32.xlu0 %v890, 111
    %v1059 = vpop.permute.xlu0 %1058
    %1060 = vrot.lane.b32.xlu0 %v891, 111
    %v1061 = vpop.permute.xlu0 %1060
    %1062 = vrot.lane.b32.xlu0 %v892, 111
    %v1063 = vpop.permute.xlu0 %1062
    %v1064 = vsel %vm469, %v1055, %v1057
    %v1065 = vsel %vm469, %v1057, %v1059
    %v1066 = vsel %vm469, %v1059, %v1061
    %v1067 = vsel %vm469, %v1061, %v1063
    %v1072 = vsel %vm1050, %v1064, 0.0
    %v1073 = vsel %vm1051, %v1065, 0.0
    %v1074 = vsel %vm1052, %v1066, 0.0
    %v1075 = vsel %vm1053, %v1067, 0.0
    %v1076 = vld [vmem:[%s6] sm:$0xff]
    %v1077 = vpack.c.bf16 %v765, %v720
    %v1078 = vpack.c.bf16 %v766, %v721
    %v1079 = vpack.c.bf16 %v767, %v722
    %v1080 = vpack.c.bf16 %v768, %v723
    %v1081 = vpack.c.bf16 %v855, %v810
    %v1082 = vpack.c.bf16 %v856, %v811
    %v1083 = vpack.c.bf16 %v857, %v812
    %v1084 = vpack.c.bf16 %v858, %v813
    %v1085 = vpack.c.bf16 %v937, %v882
    %v1086 = vpack.c.bf16 %v938, %v883
    %v1087 = vpack.c.bf16 %v939, %v884
    %v1088 = vpack.c.bf16 %v940, %v885
    %v1089 = vpack.c.bf16 %v1027, %v982
    %v1090 = vpack.c.bf16 %v1028, %v983
    %v1091 = vpack.c.bf16 %v1029, %v984
    %v1092 = vpack.c.bf16 %v1030, %v985
    %v1093 = vpack.c.bf16 %v1072, %v1072
    %v1094 = vpack.c.bf16 %v1073, %v1073
    %v1095 = vpack.c.bf16 %v1074, %v1074
    %v1096 = vpack.c.bf16 %v1075, %v1075
    %v1097 = vpack.c.bf16 %v1076, %v1076
    %v1098 = vld [vmem:[%s7] sm:$0xff]
    %1100 = vset.pattern.permute.xlu0 0
    %1101 = vperm.xlu0 %1100, %v1098
    %v1102 = vpop.permute.xlu0 %1101
    %v1105 = vsel %vm505, %v1097, 0
    %v1108 = vsel %vm509, %v1093, 0
    %v1111 = vsel %vm509, %v1094, 0
    %v1114 = vsel %vm509, %v1095, 0
    %v1117 = vsel %vm509, %v1096, 0
    %1119 = vmatprep.subr.bf16.mxu0 %v1078
    %1120 = vmatpush1.bf16.msra.mxu0 %v1077
    %1121 = vmatprep.subr.bf16.mxu0 %v1082
    %1122 = vmatpush1.bf16.msra.mxu0 %v1081
    %1123 = vmatprep.subr.bf16.mxu0 %v1086
    %1124 = vmatpush1.bf16.msra.mxu0 %v1085
    %1125 = vmatprep.subr.bf16.mxu0 %v1090
    %1126 = vmatpush1.bf16.msra.mxu0 %v1089
    %1127 = vmatprep.subr.bf16.mxu0 %v1111
    %1128 = vmatpush1.bf16.msra.mxu0 %v1108
    %1129 = vmatprep.subr.bf16.mxu0 0
    %1130 = vmatpush1.bf16.msra.mxu0 0
    %1131 = vmatprep.subr.bf16.mxu0 0
    %1132 = vmatpush1.bf16.msra.mxu0 0
    %1133 = vmatprep.subr.bf16.mxu0 0
    %1134 = vmatpush1.bf16.msra.mxu0 0
    %1135 = vmatprep.subr.bf16.mxu0 0
    %1136 = vmatpush1.bf16.msra.mxu0 0
    %1137 = vmatprep.subr.bf16.mxu0 0
    %1138 = vmatpush1.bf16.msra.mxu0 0
    %1139 = vmatprep.subr.bf16.mxu0 0
    %1140 = vmatpush1.bf16.msra.mxu0 0
    %1141 = vmatprep.subr.bf16.mxu0 0
    %1142 = vmatpush1.bf16.msra.mxu0 0
    %1143 = vmatprep.subr.bf16.mxu0 0
    %1144 = vmatpush1.bf16.msra.mxu0 0
    %1145 = vmatprep.subr.bf16.mxu0 0
    %1146 = vmatpush1.bf16.msra.mxu0 0
    %1147 = vmatprep.subr.bf16.mxu0 0
    %1148 = vmatpush1.bf16.msra.mxu0 0
    %1149 = vmatprep.subr.bf16.mxu0 0
    %1150 = vmatpush1.bf16.msra.mxu0 0
    %1151 = vmatprep.mubr.bf16.mxu0 0
    %1152 = vmatmul.mubr.bf16.gmra.mrb[0].mxu0 %v1105
    %v1153 = vpop.f32.mrb[0].mxu0
    %v1154 = vadd.f32 %v1102, %v1153
    %v1155 = vpop.f32.mrb[0].mxu0
    %v1156 = vadd.f32 %v1102, %v1155
    %v1157 = vpop.f32.mrb[0].mxu0
    %v1158 = vpop.f32.mrb[0].mxu0
    %1159 = vdwg.mxu0
    %1160 = vmatprep.subr.bf16.mxu0 %v1080
    %1161 = vmatpush1.bf16.msra.mxu0 %v1079
    %1162 = vmatprep.subr.bf16.mxu0 %v1084
    %1163 = vmatpush1.bf16.msra.mxu0 %v1083
    %1164 = vmatprep.subr.bf16.mxu0 %v1088
    %1165 = vmatpush1.bf16.msra.mxu0 %v1087
    %1166 = vmatprep.subr.bf16.mxu0 %v1092
    %1167 = vmatpush1.bf16.msra.mxu0 %v1091
    %1168 = vmatprep.subr.bf16.mxu0 %v1117
    %1169 = vmatpush1.bf16.msra.mxu0 %v1114
    %1170 = vmatprep.subr.bf16.mxu0 0
    %1171 = vmatpush1.bf16.msra.mxu0 0
    %1172 = vmatprep.subr.bf16.mxu0 0
    %1173 = vmatpush1.bf16.msra.mxu0 0
    %1174 = vmatprep.subr.bf16.mxu0 0
    %1175 = vmatpush1.bf16.msra.mxu0 0
    %1176 = vmatprep.subr.bf16.mxu0 0
    %1177 = vmatpush1.bf16.msra.mxu0 0
    %1178 = vmatprep.subr.bf16.mxu0 0
    %1179 = vmatpush1.bf16.msra.mxu0 0
    %1180 = vmatprep.subr.bf16.mxu0 0
    %1181 = vmatpush1.bf16.msra.mxu0 0
    %1182 = vmatprep.subr.bf16.mxu0 0
    %1183 = vmatpush1.bf16.msra.mxu0 0
    %1184 = vmatprep.subr.bf16.mxu0 0
    %1185 = vmatpush1.bf16.msra.mxu0 0
    %1186 = vmatprep.subr.bf16.mxu0 0
    %1187 = vmatpush1.bf16.msra.mxu0 0
    %1188 = vmatprep.subr.bf16.mxu0 0
    %1189 = vmatpush1.bf16.msra.mxu0 0
    %1190 = vmatprep.subr.bf16.mxu0 0
    %1191 = vmatpush1.bf16.msra.mxu0 0
    %1192 = vmatprep.mubr.bf16.mxu0 0
    %1193 = vmatmul.mubr.bf16.gmra.mrb[0].mxu0 %v1105
    %v1194 = vpop.f32.mrb[0].mxu0
    %v1195 = vadd.f32 %v1102, %v1194
    %v1196 = vpop.f32.mrb[0].mxu0
    %v1197 = vadd.f32 %v1102, %v1196
    %v1198 = vpop.f32.mrb[0].mxu0
    %v1199 = vpop.f32.mrb[0].mxu0
    %1200 = vdwg.mxu0
    %v1201 = vld [vmem:[%s8] sm:$0xff]
    %v1202 = vld [vmem:[%s9] sm:$0xff]
    %v1203 = vadd.f32 %v1154, %v1156
    %v1204 = vadd.f32 %v1203, %v1195
    %v1205 = vadd.f32 %v1204, %v1197
    %1206 = vadd.xlane.f32.xlu0 %v1205
    %v1207 = vpop.xlane.xlu0 %1206
    %v1208 = vmul.f32 %v1207, 0.001953125
    %v1209 = vmul.f32 %v1154, %v1154
    %v1210 = vmul.f32 %v1156, %v1156
    %v1211 = vmul.f32 %v1195, %v1195
    %v1212 = vmul.f32 %v1197, %v1197
    %v1213 = vadd.f32 %v1209, %v1210
    %v1214 = vadd.f32 %v1213, %v1211
    %v1215 = vadd.f32 %v1214, %v1212
    %1216 = vadd.xlane.f32.xlu0 %v1215
    %v1217 = vpop.xlane.xlu0 %1216
    %v1218 = vmul.f32 %v1217, 0.001953125
    %v1219 = vmul.f32 %v1208, %v1208
    %v1220 = vsub.f32 %v1218, %v1219
    %v1221 = vadd.f32 %v1220, 1e-05
    %v1222 = vrsqrt.pop %v1221
    %v1223 = vmul.f32 %v1201, %v1222
    %v1224 = vmul.f32 %v1208, %v1223
    %v1225 = vsub.f32 %v1202, %v1224
    %1227 = vset.pattern.permute.xlu0 0
    %1228 = vperm.xlu0 %1227, %v1223
    %v1229 = vpop.permute.xlu0 %1228
    %v1231 = vmul.f32 %v1154, %v1229
    %v1232 = vmul.f32 %v1156, %v1229
    %v1233 = vmul.f32 %v1195, %v1229
    %v1234 = vmul.f32 %v1197, %v1229
    %1236 = vset.pattern.permute.xlu0 0
    %1237 = vperm.xlu0 %1236, %v1225
    %v1238 = vpop.permute.xlu0 %1237
    %v1240 = vadd.f32 %v1231, %v1238
    %v1241 = vadd.f32 %v1232, %v1238
    %v1242 = vadd.f32 %v1233, %v1238
    %v1243 = vadd.f32 %v1234, %v1238
    %v1244 = vadd.f32 %v1240, %v561
    %v1245 = vadd.f32 %v1241, %v563
    %v1246 = vadd.f32 %v1242, %v604
    %v1247 = vadd.f32 %v1243, %v606
    %v1248 = vmax.f32 %v1244, 0.0
    %v1249 = vmax.f32 %v1245, 0.0
    %v1250 = vmax.f32 %v1246, 0.0
    %v1251 = vmax.f32 %v1247, 0.0
    %1252 = vst [vmem:[#allocation6] sm:$0xff] %v1248
    %1253 = vst [vmem:[#allocation6 + $0x8] sm:$0xff] %v1249
    %1254 = vst [vmem:[#allocation6 + $0x10] sm:$0xff] %v1250
    %1255 = vst [vmem:[#allocation6 + $0x18] sm:$0xff] %v1251
    // Predicated region
    $region46: #{tpu_custom_call.1} parent=1 // pred_check
      _
    $region47: #{tpu_custom_call.1} parent=1 // pred_check_branch
      %1257 = sbr.rel (0) target = $region49
    $region48: #{tpu_custom_call.1} parent=1 // pred_region
      %s1259 = ssub.s32 512, 512
      %1260 = vsyncadd [#allocation5], %s1259
      %s1262 = sshll.u32 [#allocation6], 4
      %s1263 = int_to_ptr.vmem [resolvable:$true] %s1262
      %1265 = dma.vmem_to_hbm [thread:$0]  %s1263, 512, %s10, [#allocation5]
    $region49: #{tpu_custom_call.1} parent=1 // pred_fallthru
      _
    // Predicated region
    $region50: #{tpu_custom_call.1} parent=1 // pred_check
      _
    $region51: #{tpu_custom_call.1} parent=1 // pred_check_branch
      %1267 = sbr.rel (0) target = $region53
    $region52: #{tpu_custom_call.1} parent=1 // pred_region
      %1268 = dma.done [#allocation5], 512
    $region53: #{tpu_custom_call.1} parent=1 // pred_fallthru
      _
    %1269 = vsyncpa [#allocation4], 1
    %1270 = vsyncpa [#allocation5], 1

</llo_original>
